<compile_context>
chip_gen: v7x
topology: tpu7x:2x2x1
jax: 0.10.0
libtpu: 0.0.40
codegen_flags: <defaults>
</compile_context>

<pallas_src>
import functools

import jax
import jax.numpy as jnp
from jax import lax
from jax.experimental import pallas as pl
from jax.experimental.pallas import tpu as pltpu

HIDDEN = 106
INPUT_DIM = 6
LAYERS = 2
OUT_DIM = 1

HP = 128            # padded hidden dim (lane multiple)
G4 = 4 * HP         # packed gate dim, order [i, f, g, o]
BP = 8              # padded batch dim (sublane multiple)
DP = 128            # padded layer-0 input dim (one-shot projection)
OP = 128            # padded fc output dim (lane-dense store)
PROJ_ROWS = 64      # rows (= 8 timesteps) per chunk of the hoisted projection


# ----------------------------- Pallas kernel --------------------------------

def _cell(z, c):
    """LSTM cell elementwise math, f32 on the VPU/EUP (portable incl. v5e)."""
    i = jax.nn.sigmoid(z[:, 0 * HP:1 * HP])
    f = jax.nn.sigmoid(z[:, 1 * HP:2 * HP])
    g = jnp.tanh(z[:, 2 * HP:3 * HP])
    o = jax.nn.sigmoid(z[:, 3 * HP:4 * HP])
    c_new = f * c + i * g
    h_new = o * jnp.tanh(c_new)
    return h_new, c_new


def _fused_lstm_kernel(x_ref, wih0_ref, whh0_ref, b0_ref,
                       w1cat_ref, b1_ref, wfc_ref, bfc_ref,
                       out_ref, z_scr, *, seq_len):
    n_rows = seq_len * BP

    # ---- layer-0 input projection for ALL timesteps (off the serial path) ---
    b0b = jnp.broadcast_to(b0_ref[...], (PROJ_ROWS, G4))       # hoisted broadcast

    @pl.loop(0, n_rows // PROJ_ROWS)
    def _project(ci):
        r = pl.multiple_of(ci * PROJ_ROWS, PROJ_ROWS)
        z_scr[pl.ds(r, PROJ_ROWS), :] = (
            jnp.dot(x_ref[pl.ds(r, PROJ_ROWS), :], wih0_ref[...],
                    preferred_element_type=jnp.float32) + b0b)

    # ---------- interleaved two-layer recurrence with a 1-step skew ----------
    b1b = jnp.broadcast_to(b1_ref[...], (BP, G4))               # hoisted broadcast
    zero_f = jnp.zeros((BP, HP), jnp.float32)

    def l0_step(off, h0b, c0):
        # z0_t = (x_t @ W_ih0 + b0)  +  h0_{t-1} @ W_hh0
        z0 = z_scr[pl.ds(off, BP), :] + jnp.dot(
            h0b, whh0_ref[...], preferred_element_type=jnp.float32)
        return _cell(z0, c0)

    def l1_step(y0b, h1, c1):
        # z1 = [y0 | h1] @ [W_ih1; W_hh1] + b1   (single K=256 contraction)
        lhs = jnp.concatenate([y0b, h1.astype(jnp.bfloat16)], axis=1)   # (BP, 2*HP)
        z1 = jnp.dot(lhs, w1cat_ref[...],
                     preferred_element_type=jnp.float32) + b1b
        return _cell(z1, c1)

    def fused_step(off, carry):
        # carry: (h0_{t-1} bf16, c0_{t-1} f32, h1_{t-2} f32, c1_{t-2} f32)
        h0b, c0, h1, c1 = carry
        h1n, c1n = l1_step(h0b, h1, c1)     # layer-1, one step behind (independent)
        h0n, c0n = l0_step(off, h0b, c0)    # layer-0, current step
        return (h0n.astype(jnp.bfloat16), c0n, h1n, c1n)

    # Prologue: layer-0 step 0 (h0 = c0 = 0, recurrent term vanishes).
    h0, c0 = _cell(z_scr[pl.ds(0, BP), :], zero_f)
    carry = (h0.astype(jnp.bfloat16), c0, zero_f, zero_f)
    # Fused step t = 1 (layer-1 step 0 starts from h1 = c1 = 0).
    carry = fused_step(BP, carry)

    # Main loop, manually unrolled x2: fused steps t = 2 .. seq_len-1.
    def pair_body(i, carry):
        off0 = pl.multiple_of((2 * i + 2) * BP, BP)
        carry = fused_step(off0, carry)
        off1 = pl.multiple_of((2 * i + 3) * BP, BP)
        carry = fused_step(off1, carry)
        return carry

    carry = lax.fori_loop(0, (seq_len - 2) // 2, pair_body, carry)

    # Epilogue: final layer-1 step t = seq_len-1.
    h0b, _, h1, c1 = carry
    h1_last, _ = l1_step(h0b, h1, c1)

    # ------------- ReLU + FC on the final top-layer hidden state -------------
    h_last = jnp.maximum(h1_last, 0.0)
    out_ref[...] = (jnp.dot(h_last, wfc_ref[...],
                            preferred_element_type=jnp.float32) + bfc_ref[...])


# ------------------------------ wrappers -------------------------------------

def _pack_lstm_weights(w_ih, w_hh, b_ih, b_hh, din_p):
    """PyTorch (4H, din)/(4H, H) weights -> padded, transposed bf16 matmul layout.

    NOTE: padding must be zeros — the kernel relies on padded hidden columns
    staying exactly zero through the recurrence.
    """
    H = HIDDEN
    din = w_ih.shape[1]
    w_ih4 = jnp.pad(w_ih.reshape(4, H, din),
                    ((0, 0), (0, HP - H), (0, din_p - din)))
    wih_p = jnp.transpose(w_ih4, (2, 0, 1)).reshape(din_p, G4).astype(jnp.bfloat16)

    w_hh4 = jnp.pad(w_hh.reshape(4, H, H), ((0, 0), (0, HP - H), (0, HP - H)))
    whh_p = jnp.transpose(w_hh4, (2, 0, 1)).reshape(HP, G4).astype(jnp.bfloat16)

    b = jnp.pad((b_ih + b_hh).reshape(4, H), ((0, 0), (0, HP - H))).reshape(1, G4)
    return wih_p, whh_p, b.astype(jnp.float32)


@jax.jit
def lstm_forward(x, params):
    """x: (B, T, INPUT_DIM) float32 -> (B, OUT_DIM) float32."""
    B, T, Din = x.shape
    assert T >= 2 and T % 2 == 0, "seq_len must be even and >= 2"
    assert (T * BP) % PROJ_ROWS == 0, "seq_len * BP must be a multiple of PROJ_ROWS"

    x_tm = jnp.swapaxes(x, 0, 1)                                    # (T, B, Din)
    x_pad = jnp.pad(x_tm, ((0, 0), (0, BP - B), (0, DP - Din)))
    x2d = x_pad.reshape(T * BP, DP).astype(jnp.bfloat16)            # (T*Bp, Dp)

    wih0, whh0, b0 = _pack_lstm_weights(*params['l0'], DP)
    wih1, whh1, b1 = _pack_lstm_weights(*params['l1'], HP)
    w1cat = jnp.concatenate([wih1, whh1], axis=0)                   # (2*HP, G4)

    wfc = jnp.pad(params['fc_w'].T, ((0, HP - HIDDEN), (0, OP - OUT_DIM)))
    bfc = jnp.pad(params['fc_b'].reshape(1, -1), ((0, 0), (0, OP - OUT_DIM)))

    out_p = pl.pallas_call(
        functools.partial(_fused_lstm_kernel, seq_len=T),
        out_shape=jax.ShapeDtypeStruct((BP, OP), jnp.float32),
        grid=(1,),
        in_specs=[
            pl.BlockSpec((T * BP, DP), lambda i: (0, 0)),   # x, all timesteps
            pl.BlockSpec((DP, G4), lambda i: (0, 0)),       # W_ih layer 0
            pl.BlockSpec((HP, G4), lambda i: (0, 0)),       # W_hh layer 0
            pl.BlockSpec((1, G4), lambda i: (0, 0)),        # bias layer 0
            pl.BlockSpec((2 * HP, G4), lambda i: (0, 0)),   # [W_ih1; W_hh1] concat
            pl.BlockSpec((1, G4), lambda i: (0, 0)),        # bias layer 1
            pl.BlockSpec((HP, OP), lambda i: (0, 0)),       # fc weight
            pl.BlockSpec((1, OP), lambda i: (0, 0)),        # fc bias
        ],
        out_specs=pl.BlockSpec((BP, OP), lambda i: (0, 0)),
        scratch_shapes=[
            pltpu.VMEM((T * BP, G4), jnp.float32),   # layer-0 gate pre-activations
        ],
        compiler_params=pltpu.CompilerParams(
            dimension_semantics=("arbitrary",)),
    )(x2d, wih0, whh0, b0, w1cat, b1, wfc, bfc)

    return out_p[:B, :OUT_DIM]


# --------------------------- params & reference ------------------------------

def init_params(key):
    k = 1.0 / jnp.sqrt(jnp.float32(HIDDEN))
    keys = jax.random.split(key, 10)

    def u(kk, shape):
        return jax.random.uniform(kk, shape, jnp.float32, -k, k)

    return {
        'l0': (u(keys[0], (4 * HIDDEN, INPUT_DIM)),
               u(keys[1], (4 * HIDDEN, HIDDEN)),
               u(keys[2], (4 * HIDDEN,)),
               u(keys[3], (4 * HIDDEN,))),
        'l1': (u(keys[4], (4 * HIDDEN, HIDDEN)),
               u(keys[5], (4 * HIDDEN, HIDDEN)),
               u(keys[6], (4 * HIDDEN,)),
               u(keys[7], (4 * HIDDEN,))),
        'fc_w': u(keys[8], (OUT_DIM, HIDDEN)),
        'fc_b': u(keys[9], (OUT_DIM,)),
    }


def lstm_reference(x, params):
    """Pure-JAX f32 (HIGHEST precision) reference: torch.nn.LSTM eval + ReLU + Linear."""
    B = x.shape[0]
    hd = functools.partial(jnp.dot, precision=jax.lax.Precision.HIGHEST)
    h_in = x
    for layer in range(LAYERS):
        w_ih, w_hh, b_ih, b_hh = params[f'l{layer}']

        def step(carry, xt):
            h, c = carry
            z = hd(xt, w_ih.T) + hd(h, w_hh.T) + b_ih + b_hh
            i, f, g, o = jnp.split(z, 4, axis=-1)
            i = jax.nn.sigmoid(i)
            f = jax.nn.sigmoid(f)
            g = jnp.tanh(g)
            o = jax.nn.sigmoid(o)
            c = f * c + i * g
            h = o * jnp.tanh(c)
            return (h, c), h

        h0 = jnp.zeros((B, HIDDEN), jnp.float32)
        c0 = jnp.zeros((B, HIDDEN), jnp.float32)
        (_, _), ys = jax.lax.scan(step, (h0, c0), jnp.swapaxes(h_in, 0, 1))
        h_in = jnp.swapaxes(ys, 0, 1)

    h_last = jnp.maximum(h_in[:, -1, :], 0.0)
    return hd(h_last, params['fc_w'].T) + params['fc_b']


# --------------------------------- main ---------------------------------------

if __name__ == "__main__":
    key = jax.random.PRNGKey(0)
    k_param, k_x = jax.random.split(key)

    params = init_params(k_param)
    B, T = 2, 96
    x = jax.random.normal(k_x, (B, T, INPUT_DIM), jnp.float32)

    out = jax.block_until_ready(lstm_forward(x, params))
    ref = jax.block_until_ready(lstm_reference(x, params))

    assert out.shape == (B, OUT_DIM), out.shape
    # Kernel uses bf16 MXU passes with f32 accumulate; reference is f32 HIGHEST.
    assert jnp.allclose(out, ref, atol=2e-3, rtol=2e-3), (out, ref)

    print("KERNEL_OK")
</pallas_src>

<mosaic_0001>
module attributes {stable_mosaic.version = 11 : i64} {
  func.func @_fused_lstm_kernel(%arg0: i32, %arg1: memref<768x128xbf16, #tpu.memory_space<vmem>>, %arg2: memref<128x512xbf16, #tpu.memory_space<vmem>>, %arg3: memref<128x512xbf16, #tpu.memory_space<vmem>>, %arg4: memref<1x512xf32, #tpu.memory_space<vmem>>, %arg5: memref<256x512xbf16, #tpu.memory_space<vmem>>, %arg6: memref<1x512xf32, #tpu.memory_space<vmem>>, %arg7: memref<128x128xf32, #tpu.memory_space<vmem>>, %arg8: memref<1x128xf32, #tpu.memory_space<vmem>>, %arg9: memref<8x128xf32, #tpu.memory_space<vmem>>, %arg10: memref<768x512xf32, #tpu.memory_space<vmem>>) attributes {dimension_semantics = [#tpu.dimension_semantics<arbitrary>], iteration_bounds = array<i64: 1>, scalar_prefetch = 0 : i64, scratch_operands = 1 : i64, tpu.core_type = #tpu.core_type<tc>, window_params = [{pipeline_mode = #tpu.pipeline_mode<synchronous>, transform_indices = @transform_0, window_bounds = array<i64: 768, 128>}, {pipeline_mode = #tpu.pipeline_mode<synchronous>, transform_indices = @transform_1, window_bounds = array<i64: 128, 512>}, {pipeline_mode = #tpu.pipeline_mode<synchronous>, transform_indices = @transform_2, window_bounds = array<i64: 128, 512>}, {pipeline_mode = #tpu.pipeline_mode<synchronous>, transform_indices = @transform_3, window_bounds = array<i64: 1, 512>}, {pipeline_mode = #tpu.pipeline_mode<synchronous>, transform_indices = @transform_4, window_bounds = array<i64: 256, 512>}, {pipeline_mode = #tpu.pipeline_mode<synchronous>, transform_indices = @transform_5, window_bounds = array<i64: 1, 512>}, {pipeline_mode = #tpu.pipeline_mode<synchronous>, transform_indices = @transform_6, window_bounds = array<i64: 128, 128>}, {pipeline_mode = #tpu.pipeline_mode<synchronous>, transform_indices = @transform_7, window_bounds = array<i64: 1, 128>}, {pipeline_mode = #tpu.pipeline_mode<synchronous>, transform_indices = @transform_8, window_bounds = array<i64: 8, 128>}]} {
    %c0 = arith.constant 0 : index
    %c0_0 = arith.constant 0 : index
    %0 = vector.load %arg4[%c0, %c0_0] : memref<1x512xf32, #tpu.memory_space<vmem>>, vector<1x512xf32>
    %1 = vector.shape_cast %0 : vector<1x512xf32> to vector<1x512xf32>
    %2 = vector.broadcast %1 : vector<1x512xf32> to vector<64x512xf32>
    %c0_i32 = arith.constant 0 : i32
    %c12_i32 = arith.constant 12 : i32
    %3 = arith.addi %c0_i32, %c12_i32 : i32
    %c1_i32 = arith.constant 1 : i32
    scf.for %arg11 = %c0_i32 to %3 step %c1_i32  : i32 {
      %c1_i32_39 = arith.constant 1 : i32
      %135 = arith.muli %arg11, %c1_i32_39 : i32
      %c0_i32_40 = arith.constant 0 : i32
      %136 = arith.addi %c0_i32_40, %135 : i32
      %c64_i32 = arith.constant 64 : i32
      %137 = arith.muli %136, %c64_i32 : i32
      %138 = tpu.assume_multiple %137, 64 : i32
      %139 = arith.index_cast %138 : i32 to index
      %c0_41 = arith.constant 0 : index
      %140 = vector.load %arg1[%139, %c0_41] : memref<768x128xbf16, #tpu.memory_space<vmem>>, vector<64x128xbf16>
      %c0_42 = arith.constant 0 : index
      %c0_43 = arith.constant 0 : index
      %141 = vector.load %arg2[%c0_42, %c0_43] : memref<128x512xbf16, #tpu.memory_space<vmem>>, vector<128x512xbf16>
      %cst_44 = arith.constant dense<0.000000e+00> : vector<64x512xf32>
      %142 = tpu.matmul %140, %141, %cst_44 {dimension_numbers = #tpu.dot_dimension_numbers<[1], [0], [0], [1], [0, 0, 1, 1], [], []>} : vector<64x128xbf16>, vector<128x512xbf16>, vector<64x512xf32> -> vector<64x512xf32>
      %143 = arith.addf %142, %2 : vector<64x512xf32>
      %144 = arith.index_cast %138 : i32 to index
      %c0_45 = arith.constant 0 : index
      %145 = vector.load %arg10[%144, %c0_45] : memref<768x512xf32, #tpu.memory_space<vmem>>, vector<64x512xf32>
      tpu.vector_store %arg10[%144, %c0_45], %143 {strides = array<i32>} : memref<768x512xf32, #tpu.memory_space<vmem>>, vector<64x512xf32>,
    }
    %c12_i32_1 = arith.constant 12 : i32
    %c0_2 = arith.constant 0 : index
    %c0_3 = arith.constant 0 : index
    %4 = vector.load %arg6[%c0_2, %c0_3] : memref<1x512xf32, #tpu.memory_space<vmem>>, vector<1x512xf32>
    %5 = vector.shape_cast %4 : vector<1x512xf32> to vector<1x512xf32>
    %6 = vector.broadcast %5 : vector<1x512xf32> to vector<8x512xf32>
    %cst = arith.constant 0.000000e+00 : f32
    %7 = vector.broadcast %cst : f32 to vector<8x128xf32>
    %c0_4 = arith.constant 0 : index
    %c0_5 = arith.constant 0 : index
    %8 = vector.load %arg10[%c0_4, %c0_5] : memref<768x512xf32, #tpu.memory_space<vmem>>, vector<8x512xf32>
    %9 = vector.extract_strided_slice %8 {offsets = [0, 0], sizes = [8, 128], strides = [1, 1]} : vector<8x512xf32> to vector<8x128xf32>
    %10 = arith.negf %9 : vector<8x128xf32>
    %11 = math.exp %10 : vector<8x128xf32>
    %cst_6 = arith.constant 1.000000e+00 : f32
    %12 = vector.broadcast %cst_6 : f32 to vector<8x128xf32>
    %13 = arith.addf %12, %11 : vector<8x128xf32>
    %14 = arith.divf %12, %13 : vector<8x128xf32>
    %15 = vector.extract_strided_slice %8 {offsets = [0, 128], sizes = [8, 128], strides = [1, 1]} : vector<8x512xf32> to vector<8x128xf32>
    %16 = arith.negf %15 : vector<8x128xf32>
    %17 = math.exp %16 : vector<8x128xf32>
    %cst_7 = arith.constant 1.000000e+00 : f32
    %18 = vector.broadcast %cst_7 : f32 to vector<8x128xf32>
    %19 = arith.addf %18, %17 : vector<8x128xf32>
    %20 = arith.divf %18, %19 : vector<8x128xf32>
    %21 = vector.extract_strided_slice %8 {offsets = [0, 256], sizes = [8, 128], strides = [1, 1]} : vector<8x512xf32> to vector<8x128xf32>
    %22 = math.tanh %21 : vector<8x128xf32>
    %23 = vector.extract_strided_slice %8 {offsets = [0, 384], sizes = [8, 128], strides = [1, 1]} : vector<8x512xf32> to vector<8x128xf32>
    %24 = arith.negf %23 : vector<8x128xf32>
    %25 = math.exp %24 : vector<8x128xf32>
    %cst_8 = arith.constant 1.000000e+00 : f32
    %26 = vector.broadcast %cst_8 : f32 to vector<8x128xf32>
    %27 = arith.addf %26, %25 : vector<8x128xf32>
    %28 = arith.divf %26, %27 : vector<8x128xf32>
    %29 = arith.mulf %20, %7 : vector<8x128xf32>
    %30 = arith.mulf %14, %22 : vector<8x128xf32>
    %31 = arith.addf %29, %30 : vector<8x128xf32>
    %32 = math.tanh %31 : vector<8x128xf32>
    %33 = arith.mulf %28, %32 : vector<8x128xf32>
    %34 = arith.truncf %33 : vector<8x128xf32> to vector<8x128xbf16>
    %35 = arith.truncf %7 : vector<8x128xf32> to vector<8x128xbf16>
    %36 = tpu.concatenate %34, %35 in 1 : vector<8x128xbf16>, vector<8x128xbf16> -> vector<8x256xbf16>
    %c0_9 = arith.constant 0 : index
    %c0_10 = arith.constant 0 : index
    %37 = vector.load %arg5[%c0_9, %c0_10] : memref<256x512xbf16, #tpu.memory_space<vmem>>, vector<256x512xbf16>
    %cst_11 = arith.constant dense<0.000000e+00> : vector<8x512xf32>
    %38 = tpu.matmul %36, %37, %cst_11 {dimension_numbers = #tpu.dot_dimension_numbers<[1], [0], [0], [1], [0, 0, 1, 1], [], []>} : vector<8x256xbf16>, vector<256x512xbf16>, vector<8x512xf32> -> vector<8x512xf32>
    %39 = arith.addf %38, %6 : vector<8x512xf32>
    %40 = vector.extract_strided_slice %39 {offsets = [0, 0], sizes = [8, 128], strides = [1, 1]} : vector<8x512xf32> to vector<8x128xf32>
    %41 = arith.negf %40 : vector<8x128xf32>
    %42 = math.exp %41 : vector<8x128xf32>
    %cst_12 = arith.constant 1.000000e+00 : f32
    %43 = vector.broadcast %cst_12 : f32 to vector<8x128xf32>
    %44 = arith.addf %43, %42 : vector<8x128xf32>
    %45 = arith.divf %43, %44 : vector<8x128xf32>
    %46 = vector.extract_strided_slice %39 {offsets = [0, 128], sizes = [8, 128], strides = [1, 1]} : vector<8x512xf32> to vector<8x128xf32>
    %47 = arith.negf %46 : vector<8x128xf32>
    %48 = math.exp %47 : vector<8x128xf32>
    %cst_13 = arith.constant 1.000000e+00 : f32
    %49 = vector.broadcast %cst_13 : f32 to vector<8x128xf32>
    %50 = arith.addf %49, %48 : vector<8x128xf32>
    %51 = arith.divf %49, %50 : vector<8x128xf32>
    %52 = vector.extract_strided_slice %39 {offsets = [0, 256], sizes = [8, 128], strides = [1, 1]} : vector<8x512xf32> to vector<8x128xf32>
    %53 = math.tanh %52 : vector<8x128xf32>
    %54 = vector.extract_strided_slice %39 {offsets = [0, 384], sizes = [8, 128], strides = [1, 1]} : vector<8x512xf32> to vector<8x128xf32>
    %55 = arith.negf %54 : vector<8x128xf32>
    %56 = math.exp %55 : vector<8x128xf32>
    %cst_14 = arith.constant 1.000000e+00 : f32
    %57 = vector.broadcast %cst_14 : f32 to vector<8x128xf32>
    %58 = arith.addf %57, %56 : vector<8x128xf32>
    %59 = arith.divf %57, %58 : vector<8x128xf32>
    %60 = arith.mulf %51, %7 : vector<8x128xf32>
    %61 = arith.mulf %45, %53 : vector<8x128xf32>
    %62 = arith.addf %60, %61 : vector<8x128xf32>
    %63 = math.tanh %62 : vector<8x128xf32>
    %64 = arith.mulf %59, %63 : vector<8x128xf32>
    %c8 = arith.constant 8 : index
    %c0_15 = arith.constant 0 : index
    %65 = vector.load %arg10[%c8, %c0_15] : memref<768x512xf32, #tpu.memory_space<vmem>>, vector<8x512xf32>
    %c0_16 = arith.constant 0 : index
    %c0_17 = arith.constant 0 : index
    %66 = vector.load %arg3[%c0_16, %c0_17] : memref<128x512xbf16, #tpu.memory_space<vmem>>, vector<128x512xbf16>
    %cst_18 = arith.constant dense<0.000000e+00> : vector<8x512xf32>
    %67 = tpu.matmul %34, %66, %cst_18 {dimension_numbers = #tpu.dot_dimension_numbers<[1], [0], [0], [1], [0, 0, 1, 1], [], []>} : vector<8x128xbf16>, vector<128x512xbf16>, vector<8x512xf32> -> vector<8x512xf32>
    %68 = arith.addf %65, %67 : vector<8x512xf32>
    %69 = vector.extract_strided_slice %68 {offsets = [0, 0], sizes = [8, 128], strides = [1, 1]} : vector<8x512xf32> to vector<8x128xf32>
    %70 = arith.negf %69 : vector<8x128xf32>
    %71 = math.exp %70 : vector<8x128xf32>
    %cst_19 = arith.constant 1.000000e+00 : f32
    %72 = vector.broadcast %cst_19 : f32 to vector<8x128xf32>
    %73 = arith.addf %72, %71 : vector<8x128xf32>
    %74 = arith.divf %72, %73 : vector<8x128xf32>
    %75 = vector.extract_strided_slice %68 {offsets = [0, 128], sizes = [8, 128], strides = [1, 1]} : vector<8x512xf32> to vector<8x128xf32>
    %76 = arith.negf %75 : vector<8x128xf32>
    %77 = math.exp %76 : vector<8x128xf32>
    %cst_20 = arith.constant 1.000000e+00 : f32
    %78 = vector.broadcast %cst_20 : f32 to vector<8x128xf32>
    %79 = arith.addf %78, %77 : vector<8x128xf32>
    %80 = arith.divf %78, %79 : vector<8x128xf32>
    %81 = vector.extract_strided_slice %68 {offsets = [0, 256], sizes = [8, 128], strides = [1, 1]} : vector<8x512xf32> to vector<8x128xf32>
    %82 = math.tanh %81 : vector<8x128xf32>
    %83 = vector.extract_strided_slice %68 {offsets = [0, 384], sizes = [8, 128], strides = [1, 1]} : vector<8x512xf32> to vector<8x128xf32>
    %84 = arith.negf %83 : vector<8x128xf32>
    %85 = math.exp %84 : vector<8x128xf32>
    %cst_21 = arith.constant 1.000000e+00 : f32
    %86 = vector.broadcast %cst_21 : f32 to vector<8x128xf32>
    %87 = arith.addf %86, %85 : vector<8x128xf32>
    %88 = arith.divf %86, %87 : vector<8x128xf32>
    %89 = arith.mulf %80, %31 : vector<8x128xf32>
    %90 = arith.mulf %74, %82 : vector<8x128xf32>
    %91 = arith.addf %89, %90 : vector<8x128xf32>
    %92 = math.tanh %91 : vector<8x128xf32>
    %93 = arith.mulf %88, %92 : vector<8x128xf32>
    %94 = arith.truncf %93 : vector<8x128xf32> to vector<8x128xbf16>
    %c0_i32_22 = arith.constant 0 : i32
    %c47_i32 = arith.constant 47 : i32
    %95 = arith.addi %c0_i32_22, %c47_i32 : i32
    %c1_i32_23 = arith.constant 1 : i32
    %96:4 = scf.for %arg11 = %c0_i32_22 to %95 step %c1_i32_23 iter_args(%arg12 = %94, %arg13 = %91, %arg14 = %64, %arg15 = %62) -> (vector<8x128xbf16>, vector<8x128xf32>, vector<8x128xf32>, vector<8x128xf32>)  : i32 {
      %c2_i32 = arith.constant 2 : i32
      %135 = arith.muli %c2_i32, %arg11 : i32
      %c2_i32_39 = arith.constant 2 : i32
      %136 = arith.addi %135, %c2_i32_39 : i32
      %c8_i32 = arith.constant 8 : i32
      %137 = arith.muli %136, %c8_i32 : i32
      %138 = tpu.assume_multiple %137, 8 : i32
      %139 = arith.truncf %arg14 : vector<8x128xf32> to vector<8x128xbf16>
      %140 = tpu.concatenate %arg12, %139 in 1 : vector<8x128xbf16>, vector<8x128xbf16> -> vector<8x256xbf16>
      %c0_40 = arith.constant 0 : index
      %c0_41 = arith.constant 0 : index
      %141 = vector.load %arg5[%c0_40, %c0_41] : memref<256x512xbf16, #tpu.memory_space<vmem>>, vector<256x512xbf16>
      %cst_42 = arith.constant dense<0.000000e+00> : vector<8x512xf32>
      %142 = tpu.matmul %140, %141, %cst_42 {dimension_numbers = #tpu.dot_dimension_numbers<[1], [0], [0], [1], [0, 0, 1, 1], [], []>} : vector<8x256xbf16>, vector<256x512xbf16>, vector<8x512xf32> -> vector<8x512xf32>
      %143 = arith.addf %142, %6 : vector<8x512xf32>
      %144 = vector.extract_strided_slice %143 {offsets = [0, 0], sizes = [8, 128], strides = [1, 1]} : vector<8x512xf32> to vector<8x128xf32>
      %145 = arith.negf %144 : vector<8x128xf32>
      %146 = math.exp %145 : vector<8x128xf32>
      %cst_43 = arith.constant 1.000000e+00 : f32
      %147 = vector.broadcast %cst_43 : f32 to vector<8x128xf32>
      %148 = arith.addf %147, %146 : vector<8x128xf32>
      %149 = arith.divf %147, %148 : vector<8x128xf32>
      %150 = vector.extract_strided_slice %143 {offsets = [0, 128], sizes = [8, 128], strides = [1, 1]} : vector<8x512xf32> to vector<8x128xf32>
      %151 = arith.negf %150 : vector<8x128xf32>
      %152 = math.exp %151 : vector<8x128xf32>
      %cst_44 = arith.constant 1.000000e+00 : f32
      %153 = vector.broadcast %cst_44 : f32 to vector<8x128xf32>
      %154 = arith.addf %153, %152 : vector<8x128xf32>
      %155 = arith.divf %153, %154 : vector<8x128xf32>
      %156 = vector.extract_strided_slice %143 {offsets = [0, 256], sizes = [8, 128], strides = [1, 1]} : vector<8x512xf32> to vector<8x128xf32>
      %157 = math.tanh %156 : vector<8x128xf32>
      %158 = vector.extract_strided_slice %143 {offsets = [0, 384], sizes = [8, 128], strides = [1, 1]} : vector<8x512xf32> to vector<8x128xf32>
      %159 = arith.negf %158 : vector<8x128xf32>
      %160 = math.exp %159 : vector<8x128xf32>
      %cst_45 = arith.constant 1.000000e+00 : f32
      %161 = vector.broadcast %cst_45 : f32 to vector<8x128xf32>
      %162 = arith.addf %161, %160 : vector<8x128xf32>
      %163 = arith.divf %161, %162 : vector<8x128xf32>
      %164 = arith.mulf %155, %arg15 : vector<8x128xf32>
      %165 = arith.mulf %149, %157 : vector<8x128xf32>
      %166 = arith.addf %164, %165 : vector<8x128xf32>
      %167 = math.tanh %166 : vector<8x128xf32>
      %168 = arith.mulf %163, %167 : vector<8x128xf32>
      %169 = arith.index_cast %138 : i32 to index
      %c0_46 = arith.constant 0 : index
      %170 = vector.load %arg10[%169, %c0_46] : memref<768x512xf32, #tpu.memory_space<vmem>>, vector<8x512xf32>
      %c0_47 = arith.constant 0 : index
      %c0_48 = arith.constant 0 : index
      %171 = vector.load %arg3[%c0_47, %c0_48] : memref<128x512xbf16, #tpu.memory_space<vmem>>, vector<128x512xbf16>
      %cst_49 = arith.constant dense<0.000000e+00> : vector<8x512xf32>
      %172 = tpu.matmul %arg12, %171, %cst_49 {dimension_numbers = #tpu.dot_dimension_numbers<[1], [0], [0], [1], [0, 0, 1, 1], [], []>} : vector<8x128xbf16>, vector<128x512xbf16>, vector<8x512xf32> -> vector<8x512xf32>
      %173 = arith.addf %170, %172 : vector<8x512xf32>
      %174 = vector.extract_strided_slice %173 {offsets = [0, 0], sizes = [8, 128], strides = [1, 1]} : vector<8x512xf32> to vector<8x128xf32>
      %175 = arith.negf %174 : vector<8x128xf32>
      %176 = math.exp %175 : vector<8x128xf32>
      %cst_50 = arith.constant 1.000000e+00 : f32
      %177 = vector.broadcast %cst_50 : f32 to vector<8x128xf32>
      %178 = arith.addf %177, %176 : vector<8x128xf32>
      %179 = arith.divf %177, %178 : vector<8x128xf32>
      %180 = vector.extract_strided_slice %173 {offsets = [0, 128], sizes = [8, 128], strides = [1, 1]} : vector<8x512xf32> to vector<8x128xf32>
      %181 = arith.negf %180 : vector<8x128xf32>
      %182 = math.exp %181 : vector<8x128xf32>
      %cst_51 = arith.constant 1.000000e+00 : f32
      %183 = vector.broadcast %cst_51 : f32 to vector<8x128xf32>
      %184 = arith.addf %183, %182 : vector<8x128xf32>
      %185 = arith.divf %183, %184 : vector<8x128xf32>
      %186 = vector.extract_strided_slice %173 {offsets = [0, 256], sizes = [8, 128], strides = [1, 1]} : vector<8x512xf32> to vector<8x128xf32>
      %187 = math.tanh %186 : vector<8x128xf32>
      %188 = vector.extract_strided_slice %173 {offsets = [0, 384], sizes = [8, 128], strides = [1, 1]} : vector<8x512xf32> to vector<8x128xf32>
      %189 = arith.negf %188 : vector<8x128xf32>
      %190 = math.exp %189 : vector<8x128xf32>
      %cst_52 = arith.constant 1.000000e+00 : f32
      %191 = vector.broadcast %cst_52 : f32 to vector<8x128xf32>
      %192 = arith.addf %191, %190 : vector<8x128xf32>
      %193 = arith.divf %191, %192 : vector<8x128xf32>
      %194 = arith.mulf %185, %arg13 : vector<8x128xf32>
      %195 = arith.mulf %179, %187 : vector<8x128xf32>
      %196 = arith.addf %194, %195 : vector<8x128xf32>
      %197 = math.tanh %196 : vector<8x128xf32>
      %198 = arith.mulf %193, %197 : vector<8x128xf32>
      %199 = arith.truncf %198 : vector<8x128xf32> to vector<8x128xbf16>
      %c2_i32_53 = arith.constant 2 : i32
      %200 = arith.muli %c2_i32_53, %arg11 : i32
      %c3_i32 = arith.constant 3 : i32
      %201 = arith.addi %200, %c3_i32 : i32
      %c8_i32_54 = arith.constant 8 : i32
      %202 = arith.muli %201, %c8_i32_54 : i32
      %203 = tpu.assume_multiple %202, 8 : i32
      %204 = arith.truncf %168 : vector<8x128xf32> to vector<8x128xbf16>
      %205 = tpu.concatenate %199, %204 in 1 : vector<8x128xbf16>, vector<8x128xbf16> -> vector<8x256xbf16>
      %c0_55 = arith.constant 0 : index
      %c0_56 = arith.constant 0 : index
      %206 = vector.load %arg5[%c0_55, %c0_56] : memref<256x512xbf16, #tpu.memory_space<vmem>>, vector<256x512xbf16>
      %cst_57 = arith.constant dense<0.000000e+00> : vector<8x512xf32>
      %207 = tpu.matmul %205, %206, %cst_57 {dimension_numbers = #tpu.dot_dimension_numbers<[1], [0], [0], [1], [0, 0, 1, 1], [], []>} : vector<8x256xbf16>, vector<256x512xbf16>, vector<8x512xf32> -> vector<8x512xf32>
      %208 = arith.addf %207, %6 : vector<8x512xf32>
      %209 = vector.extract_strided_slice %208 {offsets = [0, 0], sizes = [8, 128], strides = [1, 1]} : vector<8x512xf32> to vector<8x128xf32>
      %210 = arith.negf %209 : vector<8x128xf32>
      %211 = math.exp %210 : vector<8x128xf32>
      %cst_58 = arith.constant 1.000000e+00 : f32
      %212 = vector.broadcast %cst_58 : f32 to vector<8x128xf32>
      %213 = arith.addf %212, %211 : vector<8x128xf32>
      %214 = arith.divf %212, %213 : vector<8x128xf32>
      %215 = vector.extract_strided_slice %208 {offsets = [0, 128], sizes = [8, 128], strides = [1, 1]} : vector<8x512xf32> to vector<8x128xf32>
      %216 = arith.negf %215 : vector<8x128xf32>
      %217 = math.exp %216 : vector<8x128xf32>
      %cst_59 = arith.constant 1.000000e+00 : f32
      %218 = vector.broadcast %cst_59 : f32 to vector<8x128xf32>
      %219 = arith.addf %218, %217 : vector<8x128xf32>
      %220 = arith.divf %218, %219 : vector<8x128xf32>
      %221 = vector.extract_strided_slice %208 {offsets = [0, 256], sizes = [8, 128], strides = [1, 1]} : vector<8x512xf32> to vector<8x128xf32>
      %222 = math.tanh %221 : vector<8x128xf32>
      %223 = vector.extract_strided_slice %208 {offsets = [0, 384], sizes = [8, 128], strides = [1, 1]} : vector<8x512xf32> to vector<8x128xf32>
      %224 = arith.negf %223 : vector<8x128xf32>
      %225 = math.exp %224 : vector<8x128xf32>
      %cst_60 = arith.constant 1.000000e+00 : f32
      %226 = vector.broadcast %cst_60 : f32 to vector<8x128xf32>
      %227 = arith.addf %226, %225 : vector<8x128xf32>
      %228 = arith.divf %226, %227 : vector<8x128xf32>
      %229 = arith.mulf %220, %166 : vector<8x128xf32>
      %230 = arith.mulf %214, %222 : vector<8x128xf32>
      %231 = arith.addf %229, %230 : vector<8x128xf32>
      %232 = math.tanh %231 : vector<8x128xf32>
      %233 = arith.mulf %228, %232 : vector<8x128xf32>
      %234 = arith.index_cast %203 : i32 to index
      %c0_61 = arith.constant 0 : index
      %235 = vector.load %arg10[%234, %c0_61] : memref<768x512xf32, #tpu.memory_space<vmem>>, vector<8x512xf32>
      %c0_62 = arith.constant 0 : index
      %c0_63 = arith.constant 0 : index
      %236 = vector.load %arg3[%c0_62, %c0_63] : memref<128x512xbf16, #tpu.memory_space<vmem>>, vector<128x512xbf16>
      %cst_64 = arith.constant dense<0.000000e+00> : vector<8x512xf32>
      %237 = tpu.matmul %199, %236, %cst_64 {dimension_numbers = #tpu.dot_dimension_numbers<[1], [0], [0], [1], [0, 0, 1, 1], [], []>} : vector<8x128xbf16>, vector<128x512xbf16>, vector<8x512xf32> -> vector<8x512xf32>
      %238 = arith.addf %235, %237 : vector<8x512xf32>
      %239 = vector.extract_strided_slice %238 {offsets = [0, 0], sizes = [8, 128], strides = [1, 1]} : vector<8x512xf32> to vector<8x128xf32>
      %240 = arith.negf %239 : vector<8x128xf32>
      %241 = math.exp %240 : vector<8x128xf32>
      %cst_65 = arith.constant 1.000000e+00 : f32
      %242 = vector.broadcast %cst_65 : f32 to vector<8x128xf32>
      %243 = arith.addf %242, %241 : vector<8x128xf32>
      %244 = arith.divf %242, %243 : vector<8x128xf32>
      %245 = vector.extract_strided_slice %238 {offsets = [0, 128], sizes = [8, 128], strides = [1, 1]} : vector<8x512xf32> to vector<8x128xf32>
      %246 = arith.negf %245 : vector<8x128xf32>
      %247 = math.exp %246 : vector<8x128xf32>
      %cst_66 = arith.constant 1.000000e+00 : f32
      %248 = vector.broadcast %cst_66 : f32 to vector<8x128xf32>
      %249 = arith.addf %248, %247 : vector<8x128xf32>
      %250 = arith.divf %248, %249 : vector<8x128xf32>
      %251 = vector.extract_strided_slice %238 {offsets = [0, 256], sizes = [8, 128], strides = [1, 1]} : vector<8x512xf32> to vector<8x128xf32>
      %252 = math.tanh %251 : vector<8x128xf32>
      %253 = vector.extract_strided_slice %238 {offsets = [0, 384], sizes = [8, 128], strides = [1, 1]} : vector<8x512xf32> to vector<8x128xf32>
      %254 = arith.negf %253 : vector<8x128xf32>
      %255 = math.exp %254 : vector<8x128xf32>
      %cst_67 = arith.constant 1.000000e+00 : f32
      %256 = vector.broadcast %cst_67 : f32 to vector<8x128xf32>
      %257 = arith.addf %256, %255 : vector<8x128xf32>
      %258 = arith.divf %256, %257 : vector<8x128xf32>
      %259 = arith.mulf %250, %196 : vector<8x128xf32>
      %260 = arith.mulf %244, %252 : vector<8x128xf32>
      %261 = arith.addf %259, %260 : vector<8x128xf32>
      %262 = math.tanh %261 : vector<8x128xf32>
      %263 = arith.mulf %258, %262 : vector<8x128xf32>
      %264 = arith.truncf %263 : vector<8x128xf32> to vector<8x128xbf16>
      scf.yield %264, %261, %233, %231 : vector<8x128xbf16>, vector<8x128xf32>, vector<8x128xf32>, vector<8x128xf32>
    }
    %c47_i32_24 = arith.constant 47 : i32
    %97 = arith.truncf %96#2 : vector<8x128xf32> to vector<8x128xbf16>
    %98 = tpu.concatenate %96#0, %97 in 1 : vector<8x128xbf16>, vector<8x128xbf16> -> vector<8x256xbf16>
    %c0_25 = arith.constant 0 : index
    %c0_26 = arith.constant 0 : index
    %99 = vector.load %arg5[%c0_25, %c0_26] : memref<256x512xbf16, #tpu.memory_space<vmem>>, vector<256x512xbf16>
    %cst_27 = arith.constant dense<0.000000e+00> : vector<8x512xf32>
    %100 = tpu.matmul %98, %99, %cst_27 {dimension_numbers = #tpu.dot_dimension_numbers<[1], [0], [0], [1], [0, 0, 1, 1], [], []>} : vector<8x256xbf16>, vector<256x512xbf16>, vector<8x512xf32> -> vector<8x512xf32>
    %101 = arith.addf %100, %6 : vector<8x512xf32>
    %102 = vector.extract_strided_slice %101 {offsets = [0, 0], sizes = [8, 128], strides = [1, 1]} : vector<8x512xf32> to vector<8x128xf32>
    %103 = arith.negf %102 : vector<8x128xf32>
    %104 = math.exp %103 : vector<8x128xf32>
    %cst_28 = arith.constant 1.000000e+00 : f32
    %105 = vector.broadcast %cst_28 : f32 to vector<8x128xf32>
    %106 = arith.addf %105, %104 : vector<8x128xf32>
    %107 = arith.divf %105, %106 : vector<8x128xf32>
    %108 = vector.extract_strided_slice %101 {offsets = [0, 128], sizes = [8, 128], strides = [1, 1]} : vector<8x512xf32> to vector<8x128xf32>
    %109 = arith.negf %108 : vector<8x128xf32>
    %110 = math.exp %109 : vector<8x128xf32>
    %cst_29 = arith.constant 1.000000e+00 : f32
    %111 = vector.broadcast %cst_29 : f32 to vector<8x128xf32>
    %112 = arith.addf %111, %110 : vector<8x128xf32>
    %113 = arith.divf %111, %112 : vector<8x128xf32>
    %114 = vector.extract_strided_slice %101 {offsets = [0, 256], sizes = [8, 128], strides = [1, 1]} : vector<8x512xf32> to vector<8x128xf32>
    %115 = math.tanh %114 : vector<8x128xf32>
    %116 = vector.extract_strided_slice %101 {offsets = [0, 384], sizes = [8, 128], strides = [1, 1]} : vector<8x512xf32> to vector<8x128xf32>
    %117 = arith.negf %116 : vector<8x128xf32>
    %118 = math.exp %117 : vector<8x128xf32>
    %cst_30 = arith.constant 1.000000e+00 : f32
    %119 = vector.broadcast %cst_30 : f32 to vector<8x128xf32>
    %120 = arith.addf %119, %118 : vector<8x128xf32>
    %121 = arith.divf %119, %120 : vector<8x128xf32>
    %122 = arith.mulf %113, %96#3 : vector<8x128xf32>
    %123 = arith.mulf %107, %115 : vector<8x128xf32>
    %124 = arith.addf %122, %123 : vector<8x128xf32>
    %125 = math.tanh %124 : vector<8x128xf32>
    %126 = arith.mulf %121, %125 : vector<8x128xf32>
    %cst_31 = arith.constant 0.000000e+00 : f32
    %127 = vector.broadcast %cst_31 : f32 to vector<8x128xf32>
    %128 = arith.maximumf %126, %127 : vector<8x128xf32>
    %c0_32 = arith.constant 0 : index
    %c0_33 = arith.constant 0 : index
    %129 = vector.load %arg7[%c0_32, %c0_33] : memref<128x128xf32, #tpu.memory_space<vmem>>, vector<128x128xf32>
    %cst_34 = arith.constant dense<0.000000e+00> : vector<8x128xf32>
    %130 = tpu.matmul %128, %129, %cst_34 {dimension_numbers = #tpu.dot_dimension_numbers<[1], [0], [0], [1], [0, 0, 1, 1], [], []>} : vector<8x128xf32>, vector<128x128xf32>, vector<8x128xf32> -> vector<8x128xf32>
    %c0_35 = arith.constant 0 : index
    %c0_36 = arith.constant 0 : index
    %131 = vector.load %arg8[%c0_35, %c0_36] : memref<1x128xf32, #tpu.memory_space<vmem>>, vector<1x128xf32>
    %132 = vector.broadcast %131 : vector<1x128xf32> to vector<8x128xf32>
    %133 = arith.addf %130, %132 : vector<8x128xf32>
    %c0_37 = arith.constant 0 : index
    %c0_38 = arith.constant 0 : index
    %134 = vector.load %arg9[%c0_37, %c0_38] : memref<8x128xf32, #tpu.memory_space<vmem>>, vector<8x128xf32>
    tpu.vector_store %arg9[%c0_37, %c0_38], %133 {strides = array<i32>} : memref<8x128xf32, #tpu.memory_space<vmem>>, vector<8x128xf32>,
    return
  }
  func.func @transform_0(%arg0: i32) -> (i32, i32) {
    %c0_i32 = arith.constant 0 : i32
    %c0_i32_0 = arith.constant 0 : i32
    %c0_i32_1 = arith.constant 0 : i32
    return %c0_i32, %c0_i32_0 : i32, i32
  }
  func.func @transform_1(%arg0: i32) -> (i32, i32) {
    %c0_i32 = arith.constant 0 : i32
    %c0_i32_0 = arith.constant 0 : i32
    %c0_i32_1 = arith.constant 0 : i32
    return %c0_i32, %c0_i32_0 : i32, i32
  }
  func.func @transform_2(%arg0: i32) -> (i32, i32) {
    %c0_i32 = arith.constant 0 : i32
    %c0_i32_0 = arith.constant 0 : i32
    %c0_i32_1 = arith.constant 0 : i32
    return %c0_i32, %c0_i32_0 : i32, i32
  }
  func.func @transform_3(%arg0: i32) -> (i32, i32) {
    %c0_i32 = arith.constant 0 : i32
    %c0_i32_0 = arith.constant 0 : i32
    %c0_i32_1 = arith.constant 0 : i32
    return %c0_i32, %c0_i32_0 : i32, i32
  }
  func.func @transform_4(%arg0: i32) -> (i32, i32) {
    %c0_i32 = arith.constant 0 : i32
    %c0_i32_0 = arith.constant 0 : i32
    %c0_i32_1 = arith.constant 0 : i32
    return %c0_i32, %c0_i32_0 : i32, i32
  }
  func.func @transform_5(%arg0: i32) -> (i32, i32) {
    %c0_i32 = arith.constant 0 : i32
    %c0_i32_0 = arith.constant 0 : i32
    %c0_i32_1 = arith.constant 0 : i32
    return %c0_i32, %c0_i32_0 : i32, i32
  }
  func.func @transform_6(%arg0: i32) -> (i32, i32) {
    %c0_i32 = arith.constant 0 : i32
    %c0_i32_0 = arith.constant 0 : i32
    %c0_i32_1 = arith.constant 0 : i32
    return %c0_i32, %c0_i32_0 : i32, i32
  }
  func.func @transform_7(%arg0: i32) -> (i32, i32) {
    %c0_i32 = arith.constant 0 : i32
    %c0_i32_0 = arith.constant 0 : i32
    %c0_i32_1 = arith.constant 0 : i32
    return %c0_i32, %c0_i32_0 : i32, i32
  }
  func.func @transform_8(%arg0: i32) -> (i32, i32) {
    %c0_i32 = arith.constant 0 : i32
    %c0_i32_0 = arith.constant 0 : i32
    %c0_i32_1 = arith.constant 0 : i32
    return %c0_i32, %c0_i32_0 : i32, i32
  }
}

</mosaic_0001>

<llo_original>
// kernel: lstm_forward.1
$region0: #{lstm_forward.1}
  #allocation0 [shape = 'u32[]', space=smem, size = 0x4, offset = 0x4, fixed_abs, tag = 'smem constant byte address 0x4 - core index']
  #allocation1 [shape = 'u32[144,128]{1,0:T(1,128)}', space=vmem, size = 0x12000, scoped, tag = 'internal scratch']
  #allocation2 [shape = 'f32[768,512]{1,0:T(8,128)}', space=vmem, size = 0x180000, scoped, tag = 'scratch operand']
  %s0 = inlined_call_operand.vmem [shape: bf16[768,128], index: 0, kind: input, shape index: {}]
  %s1 = inlined_call_operand.vmem [shape: bf16[128,512], index: 1, kind: input, shape index: {}]
  %s2 = inlined_call_operand.vmem [shape: bf16[128,512], index: 2, kind: input, shape index: {}]
  %s3 = inlined_call_operand.vmem [shape: f32[1,512], index: 3, kind: input, shape index: {}]
  %s4 = inlined_call_operand.vmem [shape: bf16[256,512], index: 4, kind: input, shape index: {}]
  %s5 = inlined_call_operand.vmem [shape: f32[1,512], index: 5, kind: input, shape index: {}]
  %s6 = inlined_call_operand.vmem [shape: f32[128,128], index: 6, kind: input, shape index: {}]
  %s7 = inlined_call_operand.vmem [shape: f32[1,128], index: 7, kind: input, shape index: {}]
  %s8 = inlined_call_operand.vmem [shape: f32[8,128], index: 8, kind: output, shape index: {}]
  %s9 = sld [smem:[#allocation0]]
  $region56: #{lstm_forward.1} parent=0
    _
  %s11 = ssub.s32 1, %s9
  %s12 = scalar_select 0, %s11, %s9
  // Predicated region
  $region2: #{lstm_forward.1} parent=0 // pred_check
    _
  $region3: #{lstm_forward.1} parent=0 // pred_check_branch
    %14 = sbr.rel (0) target = $region5
  $region4: #{lstm_forward.1} parent=0 // pred_region
    _
  $region5: #{lstm_forward.1} parent=0 // pred_fallthru
    _
  // Predicated region
  $region6: #{lstm_forward.1} parent=0 // pred_check
    _
  $region7: #{lstm_forward.1} parent=0 // pred_check_branch
    %16 = sbr.rel (0) target = $region9
  $region8: #{lstm_forward.1} parent=0 // pred_region
    _
  $region9: #{lstm_forward.1} parent=0 // pred_fallthru
    _
  // Predicated region
  $region10: #{lstm_forward.1} parent=0 // pred_check
    _
  $region11: #{lstm_forward.1} parent=0 // pred_check_branch
    %18 = sbr.rel (0) target = $region13
  $region12: #{lstm_forward.1} parent=0 // pred_region
    _
  $region13: #{lstm_forward.1} parent=0 // pred_fallthru
    _
  // Predicated region
  $region14: #{lstm_forward.1} parent=0 // pred_check
    _
  $region15: #{lstm_forward.1} parent=0 // pred_check_branch
    %20 = sbr.rel (0) target = $region17
  $region16: #{lstm_forward.1} parent=0 // pred_region
    _
  $region17: #{lstm_forward.1} parent=0 // pred_fallthru
    _
  // Predicated region
  $region18: #{lstm_forward.1} parent=0 // pred_check
    _
  $region19: #{lstm_forward.1} parent=0 // pred_check_branch
    %22 = sbr.rel (0) target = $region21
  $region20: #{lstm_forward.1} parent=0 // pred_region
    _
  $region21: #{lstm_forward.1} parent=0 // pred_fallthru
    _
  // Predicated region
  $region22: #{lstm_forward.1} parent=0 // pred_check
    _
  $region23: #{lstm_forward.1} parent=0 // pred_check_branch
    %24 = sbr.rel (0) target = $region25
  $region24: #{lstm_forward.1} parent=0 // pred_region
    _
  $region25: #{lstm_forward.1} parent=0 // pred_fallthru
    _
  // Predicated region
  $region26: #{lstm_forward.1} parent=0 // pred_check
    _
  $region27: #{lstm_forward.1} parent=0 // pred_check_branch
    %26 = sbr.rel (0) target = $region29
  $region28: #{lstm_forward.1} parent=0 // pred_region
    _
  $region29: #{lstm_forward.1} parent=0 // pred_fallthru
    _
  // Predicated region
  $region30: #{lstm_forward.1} parent=0 // pred_check
    _
  $region31: #{lstm_forward.1} parent=0 // pred_check_branch
    %28 = sbr.rel (0) target = $region33
  $region32: #{lstm_forward.1} parent=0 // pred_region
    _
  $region33: #{lstm_forward.1} parent=0 // pred_fallthru
    _
  %v30 = vld [vmem:[%s3] sm:$0xf]
  %v32 = vlaneseq
  %v33 = vshrl.u32 %v32, 7
  %v34 = vsub.s32 0, %v33
  %v35 = vrot.slane %v30, %v34
  %v36 = vlaneseq
  %v37 = vshrl.u32 %v36, 7
  %v38 = vsub.s32 1, %v37
  %v39 = vrot.slane %v30, %v38
  %v40 = vlaneseq
  %v41 = vshrl.u32 %v40, 7
  %v42 = vsub.s32 2, %v41
  %v43 = vrot.slane %v30, %v42
  %v44 = vlaneseq
  %v45 = vshrl.u32 %v44, 7
  %v46 = vsub.s32 3, %v45
  %v47 = vrot.slane %v30, %v46
  loop: start=0, step=1, limit=12
  $region34: #{lstm_forward.1} parent=0 // loop_pre_header
    _
  $region35: #{lstm_forward.1} parent=0 // loop_header
    %s53 = sphi 0, %s57
    %p54 = scmp.ge.s32.totalorder %s53, 12
  $region36: #{lstm_forward.1} parent=0 // loop_header_branch
    %56 = sbr.rel (%p54) target = $region40
  $region37: #{lstm_forward.1} parent=0 // loop_body
    %s58 = smul.u32 %s53, 64
    %s59 = sshra.s32 %s58, 3
    %s60 = sand.u32 %s58, 7
    %s61 = smul.addr %s59, 4
    %s62 = scalar_lea.vmem %s0, %s61
    %v63 = vld [vmem:[%s62] sm:$0xf]
    %v64 = vld [vmem:[%s62 + $0x4] sm:$0xf]
    %v65 = vld [vmem:[%s62 + $0x8] sm:$0xf]
    %v66 = vld [vmem:[%s62 + $0xc] sm:$0xf]
    %v67 = vld [vmem:[%s62 + $0x10] sm:$0xf]
    %v68 = vld [vmem:[%s62 + $0x14] sm:$0xf]
    %v69 = vld [vmem:[%s62 + $0x18] sm:$0xf]
    %v70 = vld [vmem:[%s62 + $0x1c] sm:$0xf]
    %v71 = vld [vmem:[%s1] sm:$0xff]
    %v72 = vld [vmem:[%s1 + $0x8] sm:$0xff]
    %v73 = vld [vmem:[%s1 + $0x10] sm:$0xff]
    %v74 = vld [vmem:[%s1 + $0x18] sm:$0xff]
    %v75 = vld [vmem:[%s1 + $0x20] sm:$0xff]
    %v76 = vld [vmem:[%s1 + $0x28] sm:$0xff]
    %v77 = vld [vmem:[%s1 + $0x30] sm:$0xff]
    %v78 = vld [vmem:[%s1 + $0x38] sm:$0xff]
    %v79 = vld [vmem:[%s1 + $0x40] sm:$0xff]
    %v80 = vld [vmem:[%s1 + $0x48] sm:$0xff]
    %v81 = vld [vmem:[%s1 + $0x50] sm:$0xff]
    %v82 = vld [vmem:[%s1 + $0x58] sm:$0xff]
    %v83 = vld [vmem:[%s1 + $0x60] sm:$0xff]
    %v84 = vld [vmem:[%s1 + $0x68] sm:$0xff]
    %v85 = vld [vmem:[%s1 + $0x70] sm:$0xff]
    %v86 = vld [vmem:[%s1 + $0x78] sm:$0xff]
    %v87 = vld [vmem:[%s1 + $0x80] sm:$0xff]
    %v88 = vld [vmem:[%s1 + $0x88] sm:$0xff]
    %v89 = vld [vmem:[%s1 + $0x90] sm:$0xff]
    %v90 = vld [vmem:[%s1 + $0x98] sm:$0xff]
    %v91 = vld [vmem:[%s1 + $0xa0] sm:$0xff]
    %v92 = vld [vmem:[%s1 + $0xa8] sm:$0xff]
    %v93 = vld [vmem:[%s1 + $0xb0] sm:$0xff]
    %v94 = vld [vmem:[%s1 + $0xb8] sm:$0xff]
    %v95 = vld [vmem:[%s1 + $0xc0] sm:$0xff]
    %v96 = vld [vmem:[%s1 + $0xc8] sm:$0xff]
    %v97 = vld [vmem:[%s1 + $0xd0] sm:$0xff]
    %v98 = vld [vmem:[%s1 + $0xd8] sm:$0xff]
    %v99 = vld [vmem:[%s1 + $0xe0] sm:$0xff]
    %v100 = vld [vmem:[%s1 + $0xe8] sm:$0xff]
    %v101 = vld [vmem:[%s1 + $0xf0] sm:$0xff]
    %v102 = vld [vmem:[%s1 + $0xf8] sm:$0xff]
    %v111 = vunpack.c.l.b16 %v63
    %v112 = vunpack.c.l.b16 %v64
    %v113 = vunpack.c.l.b16 %v65
    %v114 = vunpack.c.l.b16 %v66
    %v115 = vunpack.c.l.b16 %v67
    %v116 = vunpack.c.l.b16 %v68
    %v117 = vunpack.c.l.b16 %v69
    %v118 = vunpack.c.l.b16 %v70
    %v119 = vpack.c.b16 %v112, %v111
    %v120 = vpack.c.b16 %v114, %v113
    %v121 = vpack.c.b16 %v116, %v115
    %v122 = vpack.c.b16 %v118, %v117
    %v159 = vunpack.c.l.b16 %v71
    %v160 = vunpack.c.h.b16 %v71
    %v161 = vunpack.c.l.b16 %v72
    %v162 = vunpack.c.h.b16 %v72
    %v163 = vunpack.c.l.b16 %v73
    %v164 = vunpack.c.h.b16 %v73
    %v165 = vunpack.c.l.b16 %v74
    %v166 = vunpack.c.h.b16 %v74
    %v167 = vunpack.c.l.b16 %v75
    %v168 = vunpack.c.h.b16 %v75
    %v169 = vunpack.c.l.b16 %v76
    %v170 = vunpack.c.h.b16 %v76
    %v171 = vunpack.c.l.b16 %v77
    %v172 = vunpack.c.h.b16 %v77
    %v173 = vunpack.c.l.b16 %v78
    %v174 = vunpack.c.h.b16 %v78
    %v175 = vunpack.c.l.b16 %v79
    %v176 = vunpack.c.h.b16 %v79
    %v177 = vunpack.c.l.b16 %v80
    %v178 = vunpack.c.h.b16 %v80
    %v179 = vunpack.c.l.b16 %v81
    %v180 = vunpack.c.h.b16 %v81
    %v181 = vunpack.c.l.b16 %v82
    %v182 = vunpack.c.h.b16 %v82
    %v183 = vunpack.c.l.b16 %v83
    %v184 = vunpack.c.h.b16 %v83
    %v185 = vunpack.c.l.b16 %v84
    %v186 = vunpack.c.h.b16 %v84
    %v187 = vunpack.c.l.b16 %v85
    %v188 = vunpack.c.h.b16 %v85
    %v189 = vunpack.c.l.b16 %v86
    %v190 = vunpack.c.h.b16 %v86
    %v191 = vunpack.c.l.b16 %v87
    %v192 = vunpack.c.h.b16 %v87
    %v193 = vunpack.c.l.b16 %v88
    %v194 = vunpack.c.h.b16 %v88
    %v195 = vunpack.c.l.b16 %v89
    %v196 = vunpack.c.h.b16 %v89
    %v197 = vunpack.c.l.b16 %v90
    %v198 = vunpack.c.h.b16 %v90
    %v199 = vunpack.c.l.b16 %v91
    %v200 = vunpack.c.h.b16 %v91
    %v201 = vunpack.c.l.b16 %v92
    %v202 = vunpack.c.h.b16 %v92
    %v203 = vunpack.c.l.b16 %v93
    %v204 = vunpack.c.h.b16 %v93
    %v205 = vunpack.c.l.b16 %v94
    %v206 = vunpack.c.h.b16 %v94
    %v207 = vunpack.c.l.b16 %v95
    %v208 = vunpack.c.h.b16 %v95
    %v209 = vunpack.c.l.b16 %v96
    %v210 = vunpack.c.h.b16 %v96
    %v211 = vunpack.c.l.b16 %v97
    %v212 = vunpack.c.h.b16 %v97
    %v213 = vunpack.c.l.b16 %v98
    %v214 = vunpack.c.h.b16 %v98
    %v215 = vunpack.c.l.b16 %v99
    %v216 = vunpack.c.h.b16 %v99
    %v217 = vunpack.c.l.b16 %v100
    %v218 = vunpack.c.h.b16 %v100
    %v219 = vunpack.c.l.b16 %v101
    %v220 = vunpack.c.h.b16 %v101
    %v221 = vunpack.c.l.b16 %v102
    %v222 = vunpack.c.h.b16 %v102
    %v223 = vpack.c.b16 %v163, %v159
    %v224 = vpack.c.b16 %v164, %v160
    %v225 = vpack.c.b16 %v165, %v161
    %v226 = vpack.c.b16 %v166, %v162
    %v227 = vpack.c.b16 %v171, %v167
    %v228 = vpack.c.b16 %v172, %v168
    %v229 = vpack.c.b16 %v173, %v169
    %v230 = vpack.c.b16 %v174, %v170
    %v231 = vpack.c.b16 %v179, %v175
    %v232 = vpack.c.b16 %v180, %v176
    %v233 = vpack.c.b16 %v181, %v177
    %v234 = vpack.c.b16 %v182, %v178
    %v235 = vpack.c.b16 %v187, %v183
    %v236 = vpack.c.b16 %v188, %v184
    %v237 = vpack.c.b16 %v189, %v185
    %v238 = vpack.c.b16 %v190, %v186
    %v239 = vpack.c.b16 %v195, %v191
    %v240 = vpack.c.b16 %v196, %v192
    %v241 = vpack.c.b16 %v197, %v193
    %v242 = vpack.c.b16 %v198, %v194
    %v243 = vpack.c.b16 %v203, %v199
    %v244 = vpack.c.b16 %v204, %v200
    %v245 = vpack.c.b16 %v205, %v201
    %v246 = vpack.c.b16 %v206, %v202
    %v247 = vpack.c.b16 %v211, %v207
    %v248 = vpack.c.b16 %v212, %v208
    %v249 = vpack.c.b16 %v213, %v209
    %v250 = vpack.c.b16 %v214, %v210
    %v251 = vpack.c.b16 %v219, %v215
    %v252 = vpack.c.b16 %v220, %v216
    %v253 = vpack.c.b16 %v221, %v217
    %v254 = vpack.c.b16 %v222, %v218
    %287 = vmatprep.subr.bf16.mxu0 %v224
    %288 = vmatpush1.bf16.msra.mxu0 %v223
    %289 = vmatprep.subr.bf16.mxu0 %v228
    %290 = vmatpush1.bf16.msra.mxu0 %v227
    %291 = vmatprep.subr.bf16.mxu0 %v232
    %292 = vmatpush1.bf16.msra.mxu0 %v231
    %293 = vmatprep.subr.bf16.mxu0 %v236
    %294 = vmatpush1.bf16.msra.mxu0 %v235
    %295 = vmatprep.subr.bf16.mxu0 %v240
    %296 = vmatpush1.bf16.msra.mxu0 %v239
    %297 = vmatprep.subr.bf16.mxu0 %v244
    %298 = vmatpush1.bf16.msra.mxu0 %v243
    %299 = vmatprep.subr.bf16.mxu0 %v248
    %300 = vmatpush1.bf16.msra.mxu0 %v247
    %301 = vmatprep.subr.bf16.mxu0 %v252
    %302 = vmatpush1.bf16.msra.mxu0 %v251
    %303 = vmatprep.subr.bf16.mxu0 0
    %304 = vmatpush1.bf16.msra.mxu0 0
    %305 = vmatprep.subr.bf16.mxu0 0
    %306 = vmatpush1.bf16.msra.mxu0 0
    %307 = vmatprep.subr.bf16.mxu0 0
    %308 = vmatpush1.bf16.msra.mxu0 0
    %309 = vmatprep.subr.bf16.mxu0 0
    %310 = vmatpush1.bf16.msra.mxu0 0
    %311 = vmatprep.subr.bf16.mxu0 0
    %312 = vmatpush1.bf16.msra.mxu0 0
    %313 = vmatprep.subr.bf16.mxu0 0
    %314 = vmatpush1.bf16.msra.mxu0 0
    %315 = vmatprep.subr.bf16.mxu0 0
    %316 = vmatpush1.bf16.msra.mxu0 0
    %317 = vmatprep.subr.bf16.mxu0 0
    %318 = vmatpush1.bf16.msra.mxu0 0
    %319 = vmatprep.mubr.bf16.mxu0 0
    %320 = vmatmul.mubr.bf16.gmra.mrb[0].mxu0 %v119
    %v321 = vpop.f32.mrb[0].mxu0
    %v322 = vadd.f32 %v35, %v321
    %v323 = vpop.f32.mrb[0].mxu0
    %v324 = vadd.f32 %v39, %v323
    %v325 = vpop.f32.mrb[0].mxu0
    %v326 = vadd.f32 %v35, %v325
    %v327 = vpop.f32.mrb[0].mxu0
    %v328 = vadd.f32 %v39, %v327
    %329 = vmatprep.mubr.bf16.mxu0 0
    %330 = vmatmul.mubr.bf16.gmra.mrb[0].mxu0 %v120
    %v331 = vpop.f32.mrb[0].mxu0
    %v332 = vadd.f32 %v35, %v331
    %v333 = vpop.f32.mrb[0].mxu0
    %v334 = vadd.f32 %v39, %v333
    %v335 = vpop.f32.mrb[0].mxu0
    %v336 = vadd.f32 %v35, %v335
    %v337 = vpop.f32.mrb[0].mxu0
    %v338 = vadd.f32 %v39, %v337
    %339 = vmatprep.mubr.bf16.mxu0 0
    %340 = vmatmul.mubr.bf16.gmra.mrb[0].mxu0 %v121
    %v341 = vpop.f32.mrb[0].mxu0
    %v342 = vadd.f32 %v35, %v341
    %v343 = vpop.f32.mrb[0].mxu0
    %v344 = vadd.f32 %v39, %v343
    %v345 = vpop.f32.mrb[0].mxu0
    %v346 = vadd.f32 %v35, %v345
    %v347 = vpop.f32.mrb[0].mxu0
    %v348 = vadd.f32 %v39, %v347
    %349 = vmatprep.mubr.bf16.mxu0 0
    %350 = vmatmul.mubr.bf16.gmra.mrb[0].mxu0 %v122
    %v351 = vpop.f32.mrb[0].mxu0
    %v352 = vadd.f32 %v35, %v351
    %v353 = vpop.f32.mrb[0].mxu0
    %v354 = vadd.f32 %v39, %v353
    %v355 = vpop.f32.mrb[0].mxu0
    %v356 = vadd.f32 %v35, %v355
    %v357 = vpop.f32.mrb[0].mxu0
    %v358 = vadd.f32 %v39, %v357
    %359 = vdwg.mxu0
    %360 = vmatprep.subr.bf16.mxu0 %v226
    %361 = vmatpush1.bf16.msra.mxu0 %v225
    %362 = vmatprep.subr.bf16.mxu0 %v230
    %363 = vmatpush1.bf16.msra.mxu0 %v229
    %364 = vmatprep.subr.bf16.mxu0 %v234
    %365 = vmatpush1.bf16.msra.mxu0 %v233
    %366 = vmatprep.subr.bf16.mxu0 %v238
    %367 = vmatpush1.bf16.msra.mxu0 %v237
    %368 = vmatprep.subr.bf16.mxu0 %v242
    %369 = vmatpush1.bf16.msra.mxu0 %v241
    %370 = vmatprep.subr.bf16.mxu0 %v246
    %371 = vmatpush1.bf16.msra.mxu0 %v245
    %372 = vmatprep.subr.bf16.mxu0 %v250
    %373 = vmatpush1.bf16.msra.mxu0 %v249
    %374 = vmatprep.subr.bf16.mxu0 %v254
    %375 = vmatpush1.bf16.msra.mxu0 %v253
    %376 = vmatprep.subr.bf16.mxu0 0
    %377 = vmatpush1.bf16.msra.mxu0 0
    %378 = vmatprep.subr.bf16.mxu0 0
    %379 = vmatpush1.bf16.msra.mxu0 0
    %380 = vmatprep.subr.bf16.mxu0 0
    %381 = vmatpush1.bf16.msra.mxu0 0
    %382 = vmatprep.subr.bf16.mxu0 0
    %383 = vmatpush1.bf16.msra.mxu0 0
    %384 = vmatprep.subr.bf16.mxu0 0
    %385 = vmatpush1.bf16.msra.mxu0 0
    %386 = vmatprep.subr.bf16.mxu0 0
    %387 = vmatpush1.bf16.msra.mxu0 0
    %388 = vmatprep.subr.bf16.mxu0 0
    %389 = vmatpush1.bf16.msra.mxu0 0
    %390 = vmatprep.subr.bf16.mxu0 0
    %391 = vmatpush1.bf16.msra.mxu0 0
    %392 = vmatprep.mubr.bf16.mxu0 0
    %393 = vmatmul.mubr.bf16.gmra.mrb[0].mxu0 %v119
    %v394 = vpop.f32.mrb[0].mxu0
    %v395 = vadd.f32 %v43, %v394
    %v396 = vpop.f32.mrb[0].mxu0
    %v397 = vadd.f32 %v47, %v396
    %v398 = vpop.f32.mrb[0].mxu0
    %v399 = vadd.f32 %v43, %v398
    %v400 = vpop.f32.mrb[0].mxu0
    %v401 = vadd.f32 %v47, %v400
    %402 = vmatprep.mubr.bf16.mxu0 0
    %403 = vmatmul.mubr.bf16.gmra.mrb[0].mxu0 %v120
    %v404 = vpop.f32.mrb[0].mxu0
    %v405 = vadd.f32 %v43, %v404
    %v406 = vpop.f32.mrb[0].mxu0
    %v407 = vadd.f32 %v47, %v406
    %v408 = vpop.f32.mrb[0].mxu0
    %v409 = vadd.f32 %v43, %v408
    %v410 = vpop.f32.mrb[0].mxu0
    %v411 = vadd.f32 %v47, %v410
    %412 = vmatprep.mubr.bf16.mxu0 0
    %413 = vmatmul.mubr.bf16.gmra.mrb[0].mxu0 %v121
    %v414 = vpop.f32.mrb[0].mxu0
    %v415 = vadd.f32 %v43, %v414
    %v416 = vpop.f32.mrb[0].mxu0
    %v417 = vadd.f32 %v47, %v416
    %v418 = vpop.f32.mrb[0].mxu0
    %v419 = vadd.f32 %v43, %v418
    %v420 = vpop.f32.mrb[0].mxu0
    %v421 = vadd.f32 %v47, %v420
    %422 = vmatprep.mubr.bf16.mxu0 0
    %423 = vmatmul.mubr.bf16.gmra.mrb[0].mxu0 %v122
    %v424 = vpop.f32.mrb[0].mxu0
    %v425 = vadd.f32 %v43, %v424
    %v426 = vpop.f32.mrb[0].mxu0
    %v427 = vadd.f32 %v47, %v426
    %v428 = vpop.f32.mrb[0].mxu0
    %v429 = vadd.f32 %v43, %v428
    %v430 = vpop.f32.mrb[0].mxu0
    %v431 = vadd.f32 %v47, %v430
    %432 = vdwg.mxu0
    %s433 = smul.u32 %s59, 4
    %s434 = smul.addr %s433, 8
    %s435 = scalar_lea.vmem [#allocation2], %s434
    %436 = vst [vmem:[%s435] sm:$0xff] %v322
    %437 = vst [vmem:[%s435 + $0x8] sm:$0xff] %v324
    %438 = vst [vmem:[%s435 + $0x10] sm:$0xff] %v395
    %439 = vst [vmem:[%s435 + $0x18] sm:$0xff] %v397
    %440 = vst [vmem:[%s435 + $0x20] sm:$0xff] %v326
    %441 = vst [vmem:[%s435 + $0x28] sm:$0xff] %v328
    %442 = vst [vmem:[%s435 + $0x30] sm:$0xff] %v399
    %443 = vst [vmem:[%s435 + $0x38] sm:$0xff] %v401
    %444 = vst [vmem:[%s435 + $0x40] sm:$0xff] %v332
    %445 = vst [vmem:[%s435 + $0x48] sm:$0xff] %v334
    %446 = vst [vmem:[%s435 + $0x50] sm:$0xff] %v405
    %447 = vst [vmem:[%s435 + $0x58] sm:$0xff] %v407
    %448 = vst [vmem:[%s435 + $0x60] sm:$0xff] %v336
    %449 = vst [vmem:[%s435 + $0x68] sm:$0xff] %v338
    %450 = vst [vmem:[%s435 + $0x70] sm:$0xff] %v409
    %451 = vst [vmem:[%s435 + $0x78] sm:$0xff] %v411
    %452 = vst [vmem:[%s435 + $0x80] sm:$0xff] %v342
    %453 = vst [vmem:[%s435 + $0x88] sm:$0xff] %v344
    %454 = vst [vmem:[%s435 + $0x90] sm:$0xff] %v415
    %455 = vst [vmem:[%s435 + $0x98] sm:$0xff] %v417
    %456 = vst [vmem:[%s435 + $0xa0] sm:$0xff] %v346
    %457 = vst [vmem:[%s435 + $0xa8] sm:$0xff] %v348
    %458 = vst [vmem:[%s435 + $0xb0] sm:$0xff] %v419
    %459 = vst [vmem:[%s435 + $0xb8] sm:$0xff] %v421
    %460 = vst [vmem:[%s435 + $0xc0] sm:$0xff] %v352
    %461 = vst [vmem:[%s435 + $0xc8] sm:$0xff] %v354
    %462 = vst [vmem:[%s435 + $0xd0] sm:$0xff] %v425
    %463 = vst [vmem:[%s435 + $0xd8] sm:$0xff] %v427
    %464 = vst [vmem:[%s435 + $0xe0] sm:$0xff] %v356
    %465 = vst [vmem:[%s435 + $0xe8] sm:$0xff] %v358
    %466 = vst [vmem:[%s435 + $0xf0] sm:$0xff] %v429
    %467 = vst [vmem:[%s435 + $0xf8] sm:$0xff] %v431
  $region38: #{lstm_forward.1} parent=0 // loop_footer
    %s57 = sadd.s32 1, %s53
  $region39: #{lstm_forward.1} parent=0 // loop_footer_branch
    %52 = sbr.rel target = $region35
  $region40: #{lstm_forward.1} parent=0 // loop_exit
    _
  %v468 = vld [vmem:[%s5] sm:$0xf]
  %v470 = vlaneseq
  %v471 = vshrl.u32 %v470, 7
  %v472 = vsub.s32 0, %v471
  %v473 = vrot.slane %v468, %v472
  %v474 = vlaneseq
  %v475 = vshrl.u32 %v474, 7
  %v476 = vsub.s32 1, %v475
  %v477 = vrot.slane %v468, %v476
  %v478 = vlaneseq
  %v479 = vshrl.u32 %v478, 7
  %v480 = vsub.s32 2, %v479
  %v481 = vrot.slane %v468, %v480
  %v482 = vlaneseq
  %v483 = vshrl.u32 %v482, 7
  %v484 = vsub.s32 3, %v483
  %v485 = vrot.slane %v468, %v484
  %v490 = vld [vmem:[#allocation2] sm:$0xff]
  %v491 = vld [vmem:[#allocation2 + $0x8] sm:$0xff]
  %v492 = vld [vmem:[#allocation2 + $0x10] sm:$0xff]
  %v493 = vld [vmem:[#allocation2 + $0x18] sm:$0xff]
  %v494 = vxor.u32 %v490, 2147483648
  %v495 = vmul.f32 %v494, 1.442695
  %v496 = vpow.pop %v495
  %v497 = vadd.f32 %v496, 1.0
  %v498 = vrcp.pop %v497
  %v499 = vmul.f32 1.0, %v498
  %v500 = vxor.u32 %v491, 2147483648
  %v501 = vmul.f32 %v500, 1.442695
  %v502 = vpow.pop %v501
  %v503 = vadd.f32 %v502, 1.0
  %v504 = vrcp.pop %v503
  %v505 = vmul.f32 1.0, %v504
  %v506 = vtanh.pop %v492
  %v507 = vxor.u32 %v493, 2147483648
  %v508 = vmul.f32 %v507, 1.442695
  %v509 = vpow.pop %v508
  %v510 = vadd.f32 %v509, 1.0
  %v511 = vrcp.pop %v510
  %v512 = vmul.f32 1.0, %v511
  %v513 = vmul.f32 %v505, 0.0
  %v514 = vmul.f32 %v499, %v506
  %v515 = vadd.f32 %v513, %v514
  %v516 = vtanh.pop %v515
  %v517 = vmul.f32 %v512, %v516
  %v518 = vpack.c.bf16 %v517, %v517
  %v519 = vld [vmem:[%s4] sm:$0xff]
  %v520 = vld [vmem:[%s4 + $0x8] sm:$0xff]
  %v521 = vld [vmem:[%s4 + $0x10] sm:$0xff]
  %v522 = vld [vmem:[%s4 + $0x18] sm:$0xff]
  %v523 = vld [vmem:[%s4 + $0x20] sm:$0xff]
  %v524 = vld [vmem:[%s4 + $0x28] sm:$0xff]
  %v525 = vld [vmem:[%s4 + $0x30] sm:$0xff]
  %v526 = vld [vmem:[%s4 + $0x38] sm:$0xff]
  %v527 = vld [vmem:[%s4 + $0x40] sm:$0xff]
  %v528 = vld [vmem:[%s4 + $0x48] sm:$0xff]
  %v529 = vld [vmem:[%s4 + $0x50] sm:$0xff]
  %v530 = vld [vmem:[%s4 + $0x58] sm:$0xff]
  %v531 = vld [vmem:[%s4 + $0x60] sm:$0xff]
  %v532 = vld [vmem:[%s4 + $0x68] sm:$0xff]
  %v533 = vld [vmem:[%s4 + $0x70] sm:$0xff]
  %v534 = vld [vmem:[%s4 + $0x78] sm:$0xff]
  %v535 = vld [vmem:[%s4 + $0x80] sm:$0xff]
  %v536 = vld [vmem:[%s4 + $0x88] sm:$0xff]
  %v537 = vld [vmem:[%s4 + $0x90] sm:$0xff]
  %v538 = vld [vmem:[%s4 + $0x98] sm:$0xff]
  %v539 = vld [vmem:[%s4 + $0xa0] sm:$0xff]
  %v540 = vld [vmem:[%s4 + $0xa8] sm:$0xff]
  %v541 = vld [vmem:[%s4 + $0xb0] sm:$0xff]
  %v542 = vld [vmem:[%s4 + $0xb8] sm:$0xff]
  %v543 = vld [vmem:[%s4 + $0xc0] sm:$0xff]
  %v544 = vld [vmem:[%s4 + $0xc8] sm:$0xff]
  %v545 = vld [vmem:[%s4 + $0xd0] sm:$0xff]
  %v546 = vld [vmem:[%s4 + $0xd8] sm:$0xff]
  %v547 = vld [vmem:[%s4 + $0xe0] sm:$0xff]
  %v548 = vld [vmem:[%s4 + $0xe8] sm:$0xff]
  %v549 = vld [vmem:[%s4 + $0xf0] sm:$0xff]
  %v550 = vld [vmem:[%s4 + $0xf8] sm:$0xff]
  %v551 = vld [vmem:[%s4 + $0x100] sm:$0xff]
  %v552 = vld [vmem:[%s4 + $0x108] sm:$0xff]
  %v553 = vld [vmem:[%s4 + $0x110] sm:$0xff]
  %v554 = vld [vmem:[%s4 + $0x118] sm:$0xff]
  %v555 = vld [vmem:[%s4 + $0x120] sm:$0xff]
  %v556 = vld [vmem:[%s4 + $0x128] sm:$0xff]
  %v557 = vld [vmem:[%s4 + $0x130] sm:$0xff]
  %v558 = vld [vmem:[%s4 + $0x138] sm:$0xff]
  %v559 = vld [vmem:[%s4 + $0x140] sm:$0xff]
  %v560 = vld [vmem:[%s4 + $0x148] sm:$0xff]
  %v561 = vld [vmem:[%s4 + $0x150] sm:$0xff]
  %v562 = vld [vmem:[%s4 + $0x158] sm:$0xff]
  %v563 = vld [vmem:[%s4 + $0x160] sm:$0xff]
  %v564 = vld [vmem:[%s4 + $0x168] sm:$0xff]
  %v565 = vld [vmem:[%s4 + $0x170] sm:$0xff]
  %v566 = vld [vmem:[%s4 + $0x178] sm:$0xff]
  %v567 = vld [vmem:[%s4 + $0x180] sm:$0xff]
  %v568 = vld [vmem:[%s4 + $0x188] sm:$0xff]
  %v569 = vld [vmem:[%s4 + $0x190] sm:$0xff]
  %v570 = vld [vmem:[%s4 + $0x198] sm:$0xff]
  %v571 = vld [vmem:[%s4 + $0x1a0] sm:$0xff]
  %v572 = vld [vmem:[%s4 + $0x1a8] sm:$0xff]
  %v573 = vld [vmem:[%s4 + $0x1b0] sm:$0xff]
  %v574 = vld [vmem:[%s4 + $0x1b8] sm:$0xff]
  %v575 = vld [vmem:[%s4 + $0x1c0] sm:$0xff]
  %v576 = vld [vmem:[%s4 + $0x1c8] sm:$0xff]
  %v577 = vld [vmem:[%s4 + $0x1d0] sm:$0xff]
  %v578 = vld [vmem:[%s4 + $0x1d8] sm:$0xff]
  %v579 = vld [vmem:[%s4 + $0x1e0] sm:$0xff]
  %v580 = vld [vmem:[%s4 + $0x1e8] sm:$0xff]
  %v581 = vld [vmem:[%s4 + $0x1f0] sm:$0xff]
  %v582 = vld [vmem:[%s4 + $0x1f8] sm:$0xff]
  %v647 = vunpack.c.l.b16 %v519
  %v648 = vunpack.c.h.b16 %v519
  %v649 = vunpack.c.l.b16 %v520
  %v650 = vunpack.c.h.b16 %v520
  %v651 = vunpack.c.l.b16 %v521
  %v652 = vunpack.c.h.b16 %v521
  %v653 = vunpack.c.l.b16 %v522
  %v654 = vunpack.c.h.b16 %v522
  %v655 = vunpack.c.l.b16 %v523
  %v656 = vunpack.c.h.b16 %v523
  %v657 = vunpack.c.l.b16 %v524
  %v658 = vunpack.c.h.b16 %v524
  %v659 = vunpack.c.l.b16 %v525
  %v660 = vunpack.c.h.b16 %v525
  %v661 = vunpack.c.l.b16 %v526
  %v662 = vunpack.c.h.b16 %v526
  %v663 = vunpack.c.l.b16 %v527
  %v664 = vunpack.c.h.b16 %v527
  %v665 = vunpack.c.l.b16 %v528
  %v666 = vunpack.c.h.b16 %v528
  %v667 = vunpack.c.l.b16 %v529
  %v668 = vunpack.c.h.b16 %v529
  %v669 = vunpack.c.l.b16 %v530
  %v670 = vunpack.c.h.b16 %v530
  %v671 = vunpack.c.l.b16 %v531
  %v672 = vunpack.c.h.b16 %v531
  %v673 = vunpack.c.l.b16 %v532
  %v674 = vunpack.c.h.b16 %v532
  %v675 = vunpack.c.l.b16 %v533
  %v676 = vunpack.c.h.b16 %v533
  %v677 = vunpack.c.l.b16 %v534
  %v678 = vunpack.c.h.b16 %v534
  %v679 = vunpack.c.l.b16 %v535
  %v680 = vunpack.c.h.b16 %v535
  %v681 = vunpack.c.l.b16 %v536
  %v682 = vunpack.c.h.b16 %v536
  %v683 = vunpack.c.l.b16 %v537
  %v684 = vunpack.c.h.b16 %v537
  %v685 = vunpack.c.l.b16 %v538
  %v686 = vunpack.c.h.b16 %v538
  %v687 = vunpack.c.l.b16 %v539
  %v688 = vunpack.c.h.b16 %v539
  %v689 = vunpack.c.l.b16 %v540
  %v690 = vunpack.c.h.b16 %v540
  %v691 = vunpack.c.l.b16 %v541
  %v692 = vunpack.c.h.b16 %v541
  %v693 = vunpack.c.l.b16 %v542
  %v694 = vunpack.c.h.b16 %v542
  %v695 = vunpack.c.l.b16 %v543
  %v696 = vunpack.c.h.b16 %v543
  %v697 = vunpack.c.l.b16 %v544
  %v698 = vunpack.c.h.b16 %v544
  %v699 = vunpack.c.l.b16 %v545
  %v700 = vunpack.c.h.b16 %v545
  %v701 = vunpack.c.l.b16 %v546
  %v702 = vunpack.c.h.b16 %v546
  %v703 = vunpack.c.l.b16 %v547
  %v704 = vunpack.c.h.b16 %v547
  %v705 = vunpack.c.l.b16 %v548
  %v706 = vunpack.c.h.b16 %v548
  %v707 = vunpack.c.l.b16 %v549
  %v708 = vunpack.c.h.b16 %v549
  %v709 = vunpack.c.l.b16 %v550
  %v710 = vunpack.c.h.b16 %v550
  %v711 = vunpack.c.l.b16 %v551
  %v712 = vunpack.c.h.b16 %v551
  %v713 = vunpack.c.l.b16 %v552
  %v714 = vunpack.c.h.b16 %v552
  %v715 = vunpack.c.l.b16 %v553
  %v716 = vunpack.c.h.b16 %v553
  %v717 = vunpack.c.l.b16 %v554
  %v718 = vunpack.c.h.b16 %v554
  %v719 = vunpack.c.l.b16 %v555
  %v720 = vunpack.c.h.b16 %v555
  %v721 = vunpack.c.l.b16 %v556
  %v722 = vunpack.c.h.b16 %v556
  %v723 = vunpack.c.l.b16 %v557
  %v724 = vunpack.c.h.b16 %v557
  %v725 = vunpack.c.l.b16 %v558
  %v726 = vunpack.c.h.b16 %v558
  %v727 = vunpack.c.l.b16 %v559
  %v728 = vunpack.c.h.b16 %v559
  %v729 = vunpack.c.l.b16 %v560
  %v730 = vunpack.c.h.b16 %v560
  %v731 = vunpack.c.l.b16 %v561
  %v732 = vunpack.c.h.b16 %v561
  %v733 = vunpack.c.l.b16 %v562
  %v734 = vunpack.c.h.b16 %v562
  %v735 = vunpack.c.l.b16 %v563
  %v736 = vunpack.c.h.b16 %v563
  %v737 = vunpack.c.l.b16 %v564
  %v738 = vunpack.c.h.b16 %v564
  %v739 = vunpack.c.l.b16 %v565
  %v740 = vunpack.c.h.b16 %v565
  %v741 = vunpack.c.l.b16 %v566
  %v742 = vunpack.c.h.b16 %v566
  %v743 = vunpack.c.l.b16 %v567
  %v744 = vunpack.c.h.b16 %v567
  %v745 = vunpack.c.l.b16 %v568
  %v746 = vunpack.c.h.b16 %v568
  %v747 = vunpack.c.l.b16 %v569
  %v748 = vunpack.c.h.b16 %v569
  %v749 = vunpack.c.l.b16 %v570
  %v750 = vunpack.c.h.b16 %v570
  %v751 = vunpack.c.l.b16 %v571
  %v752 = vunpack.c.h.b16 %v571
  %v753 = vunpack.c.l.b16 %v572
  %v754 = vunpack.c.h.b16 %v572
  %v755 = vunpack.c.l.b16 %v573
  %v756 = vunpack.c.h.b16 %v573
  %v757 = vunpack.c.l.b16 %v574
  %v758 = vunpack.c.h.b16 %v574
  %v759 = vunpack.c.l.b16 %v575
  %v760 = vunpack.c.h.b16 %v575
  %v761 = vunpack.c.l.b16 %v576
  %v762 = vunpack.c.h.b16 %v576
  %v763 = vunpack.c.l.b16 %v577
  %v764 = vunpack.c.h.b16 %v577
  %v765 = vunpack.c.l.b16 %v578
  %v766 = vunpack.c.h.b16 %v578
  %v767 = vunpack.c.l.b16 %v579
  %v768 = vunpack.c.h.b16 %v579
  %v769 = vunpack.c.l.b16 %v580
  %v770 = vunpack.c.h.b16 %v580
  %v771 = vunpack.c.l.b16 %v581
  %v772 = vunpack.c.h.b16 %v581
  %v773 = vunpack.c.l.b16 %v582
  %v774 = vunpack.c.h.b16 %v582
  %v775 = vpack.c.b16 %v651, %v647
  %v776 = vpack.c.b16 %v652, %v648
  %v777 = vpack.c.b16 %v653, %v649
  %v778 = vpack.c.b16 %v654, %v650
  %v779 = vpack.c.b16 %v659, %v655
  %v780 = vpack.c.b16 %v660, %v656
  %v781 = vpack.c.b16 %v661, %v657
  %v782 = vpack.c.b16 %v662, %v658
  %v783 = vpack.c.b16 %v667, %v663
  %v784 = vpack.c.b16 %v668, %v664
  %v785 = vpack.c.b16 %v669, %v665
  %v786 = vpack.c.b16 %v670, %v666
  %v787 = vpack.c.b16 %v675, %v671
  %v788 = vpack.c.b16 %v676, %v672
  %v789 = vpack.c.b16 %v677, %v673
  %v790 = vpack.c.b16 %v678, %v674
  %v791 = vpack.c.b16 %v683, %v679
  %v792 = vpack.c.b16 %v684, %v680
  %v793 = vpack.c.b16 %v685, %v681
  %v794 = vpack.c.b16 %v686, %v682
  %v795 = vpack.c.b16 %v691, %v687
  %v796 = vpack.c.b16 %v692, %v688
  %v797 = vpack.c.b16 %v693, %v689
  %v798 = vpack.c.b16 %v694, %v690
  %v799 = vpack.c.b16 %v699, %v695
  %v800 = vpack.c.b16 %v700, %v696
  %v801 = vpack.c.b16 %v701, %v697
  %v802 = vpack.c.b16 %v702, %v698
  %v803 = vpack.c.b16 %v707, %v703
  %v804 = vpack.c.b16 %v708, %v704
  %v805 = vpack.c.b16 %v709, %v705
  %v806 = vpack.c.b16 %v710, %v706
  %v807 = vpack.c.b16 %v715, %v711
  %v808 = vpack.c.b16 %v716, %v712
  %v809 = vpack.c.b16 %v717, %v713
  %v810 = vpack.c.b16 %v718, %v714
  %v811 = vpack.c.b16 %v723, %v719
  %v812 = vpack.c.b16 %v724, %v720
  %v813 = vpack.c.b16 %v725, %v721
  %v814 = vpack.c.b16 %v726, %v722
  %v815 = vpack.c.b16 %v731, %v727
  %v816 = vpack.c.b16 %v732, %v728
  %v817 = vpack.c.b16 %v733, %v729
  %v818 = vpack.c.b16 %v734, %v730
  %v819 = vpack.c.b16 %v739, %v735
  %v820 = vpack.c.b16 %v740, %v736
  %v821 = vpack.c.b16 %v741, %v737
  %v822 = vpack.c.b16 %v742, %v738
  %v823 = vpack.c.b16 %v747, %v743
  %v824 = vpack.c.b16 %v748, %v744
  %v825 = vpack.c.b16 %v749, %v745
  %v826 = vpack.c.b16 %v750, %v746
  %v827 = vpack.c.b16 %v755, %v751
  %v828 = vpack.c.b16 %v756, %v752
  %v829 = vpack.c.b16 %v757, %v753
  %v830 = vpack.c.b16 %v758, %v754
  %v831 = vpack.c.b16 %v763, %v759
  %v832 = vpack.c.b16 %v764, %v760
  %v833 = vpack.c.b16 %v765, %v761
  %v834 = vpack.c.b16 %v766, %v762
  %v835 = vpack.c.b16 %v771, %v767
  %v836 = vpack.c.b16 %v772, %v768
  %v837 = vpack.c.b16 %v773, %v769
  %v838 = vpack.c.b16 %v774, %v770
  %903 = vmatprep.subr.bf16.mxu0 %v776
  %904 = vmatpush1.bf16.msra.mxu0 %v775
  %905 = vmatprep.subr.bf16.mxu0 %v780
  %906 = vmatpush1.bf16.msra.mxu0 %v779
  %907 = vmatprep.subr.bf16.mxu0 %v784
  %908 = vmatpush1.bf16.msra.mxu0 %v783
  %909 = vmatprep.subr.bf16.mxu0 %v788
  %910 = vmatpush1.bf16.msra.mxu0 %v787
  %911 = vmatprep.subr.bf16.mxu0 %v792
  %912 = vmatpush1.bf16.msra.mxu0 %v791
  %913 = vmatprep.subr.bf16.mxu0 %v796
  %914 = vmatpush1.bf16.msra.mxu0 %v795
  %915 = vmatprep.subr.bf16.mxu0 %v800
  %916 = vmatpush1.bf16.msra.mxu0 %v799
  %917 = vmatprep.subr.bf16.mxu0 %v804
  %918 = vmatpush1.bf16.msra.mxu0 %v803
  %919 = vmatprep.subr.bf16.mxu0 %v808
  %920 = vmatpush1.bf16.msra.mxu0 %v807
  %921 = vmatprep.subr.bf16.mxu0 %v812
  %922 = vmatpush1.bf16.msra.mxu0 %v811
  %923 = vmatprep.subr.bf16.mxu0 %v816
  %924 = vmatpush1.bf16.msra.mxu0 %v815
  %925 = vmatprep.subr.bf16.mxu0 %v820
  %926 = vmatpush1.bf16.msra.mxu0 %v819
  %927 = vmatprep.subr.bf16.mxu0 %v824
  %928 = vmatpush1.bf16.msra.mxu0 %v823
  %929 = vmatprep.subr.bf16.mxu0 %v828
  %930 = vmatpush1.bf16.msra.mxu0 %v827
  %931 = vmatprep.subr.bf16.mxu0 %v832
  %932 = vmatpush1.bf16.msra.mxu0 %v831
  %933 = vmatprep.subr.bf16.mxu0 %v836
  %934 = vmatpush1.bf16.msra.mxu0 %v835
  %935 = vmatprep.mubr.bf16.mxu0 0
  %936 = vmatmul.mubr.bf16.gmra.mrb[0].mxu0 %v518
  %v937 = vpop.f32.mrb[0].mxu0
  %v938 = vadd.f32 %v473, %v937
  %v939 = vpop.f32.mrb[0].mxu0
  %v940 = vadd.f32 %v477, %v939
  %v941 = vpop.f32.mrb[0].mxu0
  %v942 = vpop.f32.mrb[0].mxu0
  %943 = vdwg.mxu0
  %944 = vmatprep.subr.bf16.mxu0 %v778
  %945 = vmatpush1.bf16.msra.mxu0 %v777
  %946 = vmatprep.subr.bf16.mxu0 %v782
  %947 = vmatpush1.bf16.msra.mxu0 %v781
  %948 = vmatprep.subr.bf16.mxu0 %v786
  %949 = vmatpush1.bf16.msra.mxu0 %v785
  %950 = vmatprep.subr.bf16.mxu0 %v790
  %951 = vmatpush1.bf16.msra.mxu0 %v789
  %952 = vmatprep.subr.bf16.mxu0 %v794
  %953 = vmatpush1.bf16.msra.mxu0 %v793
  %954 = vmatprep.subr.bf16.mxu0 %v798
  %955 = vmatpush1.bf16.msra.mxu0 %v797
  %956 = vmatprep.subr.bf16.mxu0 %v802
  %957 = vmatpush1.bf16.msra.mxu0 %v801
  %958 = vmatprep.subr.bf16.mxu0 %v806
  %959 = vmatpush1.bf16.msra.mxu0 %v805
  %960 = vmatprep.subr.bf16.mxu0 %v810
  %961 = vmatpush1.bf16.msra.mxu0 %v809
  %962 = vmatprep.subr.bf16.mxu0 %v814
  %963 = vmatpush1.bf16.msra.mxu0 %v813
  %964 = vmatprep.subr.bf16.mxu0 %v818
  %965 = vmatpush1.bf16.msra.mxu0 %v817
  %966 = vmatprep.subr.bf16.mxu0 %v822
  %967 = vmatpush1.bf16.msra.mxu0 %v821
  %968 = vmatprep.subr.bf16.mxu0 %v826
  %969 = vmatpush1.bf16.msra.mxu0 %v825
  %970 = vmatprep.subr.bf16.mxu0 %v830
  %971 = vmatpush1.bf16.msra.mxu0 %v829
  %972 = vmatprep.subr.bf16.mxu0 %v834
  %973 = vmatpush1.bf16.msra.mxu0 %v833
  %974 = vmatprep.subr.bf16.mxu0 %v838
  %975 = vmatpush1.bf16.msra.mxu0 %v837
  %976 = vmatprep.mubr.bf16.mxu0 0
  %977 = vmatmul.mubr.bf16.gmra.mrb[0].mxu0 %v518
  %v978 = vpop.f32.mrb[0].mxu0
  %v979 = vadd.f32 %v481, %v978
  %v980 = vpop.f32.mrb[0].mxu0
  %v981 = vadd.f32 %v485, %v980
  %v982 = vpop.f32.mrb[0].mxu0
  %v983 = vpop.f32.mrb[0].mxu0
  %984 = vdwg.mxu0
  %v985 = vxor.u32 %v938, 2147483648
  %v986 = vmul.f32 %v985, 1.442695
  %v987 = vpow.pop %v986
  %v988 = vadd.f32 %v987, 1.0
  %v989 = vrcp.pop %v988
  %v990 = vmul.f32 1.0, %v989
  %v991 = vxor.u32 %v940, 2147483648
  %v992 = vmul.f32 %v991, 1.442695
  %v993 = vpow.pop %v992
  %v994 = vadd.f32 %v993, 1.0
  %v995 = vrcp.pop %v994
  %v996 = vmul.f32 1.0, %v995
  %v997 = vtanh.pop %v979
  %v998 = vxor.u32 %v981, 2147483648
  %v999 = vmul.f32 %v998, 1.442695
  %v1000 = vpow.pop %v999
  %v1001 = vadd.f32 %v1000, 1.0
  %v1002 = vrcp.pop %v1001
  %v1003 = vmul.f32 1.0, %v1002
  %v1004 = vmul.f32 %v996, 0.0
  %v1005 = vmul.f32 %v990, %v997
  %v1006 = vadd.f32 %v1004, %v1005
  %v1007 = vtanh.pop %v1006
  %v1008 = vmul.f32 %v1003, %v1007
  %v1009 = vld [vmem:[#allocation2 + $0x20] sm:$0xff]
  %v1010 = vld [vmem:[#allocation2 + $0x28] sm:$0xff]
  %v1011 = vld [vmem:[#allocation2 + $0x30] sm:$0xff]
  %v1012 = vld [vmem:[#allocation2 + $0x38] sm:$0xff]
  %v1013 = vld [vmem:[%s2] sm:$0xff]
  %v1014 = vld [vmem:[%s2 + $0x8] sm:$0xff]
  %v1015 = vld [vmem:[%s2 + $0x10] sm:$0xff]
  %v1016 = vld [vmem:[%s2 + $0x18] sm:$0xff]
  %v1017 = vld [vmem:[%s2 + $0x20] sm:$0xff]
  %v1018 = vld [vmem:[%s2 + $0x28] sm:$0xff]
  %v1019 = vld [vmem:[%s2 + $0x30] sm:$0xff]
  %v1020 = vld [vmem:[%s2 + $0x38] sm:$0xff]
  %v1021 = vld [vmem:[%s2 + $0x40] sm:$0xff]
  %v1022 = vld [vmem:[%s2 + $0x48] sm:$0xff]
  %v1023 = vld [vmem:[%s2 + $0x50] sm:$0xff]
  %v1024 = vld [vmem:[%s2 + $0x58] sm:$0xff]
  %v1025 = vld [vmem:[%s2 + $0x60] sm:$0xff]
  %v1026 = vld [vmem:[%s2 + $0x68] sm:$0xff]
  %v1027 = vld [vmem:[%s2 + $0x70] sm:$0xff]
  %v1028 = vld [vmem:[%s2 + $0x78] sm:$0xff]
  %v1029 = vld [vmem:[%s2 + $0x80] sm:$0xff]
  %v1030 = vld [vmem:[%s2 + $0x88] sm:$0xff]
  %v1031 = vld [vmem:[%s2 + $0x90] sm:$0xff]
  %v1032 = vld [vmem:[%s2 + $0x98] sm:$0xff]
  %v1033 = vld [vmem:[%s2 + $0xa0] sm:$0xff]
  %v1034 = vld [vmem:[%s2 + $0xa8] sm:$0xff]
  %v1035 = vld [vmem:[%s2 + $0xb0] sm:$0xff]
  %v1036 = vld [vmem:[%s2 + $0xb8] sm:$0xff]
  %v1037 = vld [vmem:[%s2 + $0xc0] sm:$0xff]
  %v1038 = vld [vmem:[%s2 + $0xc8] sm:$0xff]
  %v1039 = vld [vmem:[%s2 + $0xd0] sm:$0xff]
  %v1040 = vld [vmem:[%s2 + $0xd8] sm:$0xff]
  %v1041 = vld [vmem:[%s2 + $0xe0] sm:$0xff]
  %v1042 = vld [vmem:[%s2 + $0xe8] sm:$0xff]
  %v1043 = vld [vmem:[%s2 + $0xf0] sm:$0xff]
  %v1044 = vld [vmem:[%s2 + $0xf8] sm:$0xff]
  %v1077 = vunpack.c.l.b16 %v1013
  %v1078 = vunpack.c.h.b16 %v1013
  %v1079 = vunpack.c.l.b16 %v1014
  %v1080 = vunpack.c.h.b16 %v1014
  %v1081 = vunpack.c.l.b16 %v1015
  %v1082 = vunpack.c.h.b16 %v1015
  %v1083 = vunpack.c.l.b16 %v1016
  %v1084 = vunpack.c.h.b16 %v1016
  %v1085 = vunpack.c.l.b16 %v1017
  %v1086 = vunpack.c.h.b16 %v1017
  %v1087 = vunpack.c.l.b16 %v1018
  %v1088 = vunpack.c.h.b16 %v1018
  %v1089 = vunpack.c.l.b16 %v1019
  %v1090 = vunpack.c.h.b16 %v1019
  %v1091 = vunpack.c.l.b16 %v1020
  %v1092 = vunpack.c.h.b16 %v1020
  %v1093 = vunpack.c.l.b16 %v1021
  %v1094 = vunpack.c.h.b16 %v1021
  %v1095 = vunpack.c.l.b16 %v1022
  %v1096 = vunpack.c.h.b16 %v1022
  %v1097 = vunpack.c.l.b16 %v1023
  %v1098 = vunpack.c.h.b16 %v1023
  %v1099 = vunpack.c.l.b16 %v1024
  %v1100 = vunpack.c.h.b16 %v1024
  %v1101 = vunpack.c.l.b16 %v1025
  %v1102 = vunpack.c.h.b16 %v1025
  %v1103 = vunpack.c.l.b16 %v1026
  %v1104 = vunpack.c.h.b16 %v1026
  %v1105 = vunpack.c.l.b16 %v1027
  %v1106 = vunpack.c.h.b16 %v1027
  %v1107 = vunpack.c.l.b16 %v1028
  %v1108 = vunpack.c.h.b16 %v1028
  %v1109 = vunpack.c.l.b16 %v1029
  %v1110 = vunpack.c.h.b16 %v1029
  %v1111 = vunpack.c.l.b16 %v1030
  %v1112 = vunpack.c.h.b16 %v1030
  %v1113 = vunpack.c.l.b16 %v1031
  %v1114 = vunpack.c.h.b16 %v1031
  %v1115 = vunpack.c.l.b16 %v1032
  %v1116 = vunpack.c.h.b16 %v1032
  %v1117 = vunpack.c.l.b16 %v1033
  %v1118 = vunpack.c.h.b16 %v1033
  %v1119 = vunpack.c.l.b16 %v1034
  %v1120 = vunpack.c.h.b16 %v1034
  %v1121 = vunpack.c.l.b16 %v1035
  %v1122 = vunpack.c.h.b16 %v1035
  %v1123 = vunpack.c.l.b16 %v1036
  %v1124 = vunpack.c.h.b16 %v1036
  %v1125 = vunpack.c.l.b16 %v1037
  %v1126 = vunpack.c.h.b16 %v1037
  %v1127 = vunpack.c.l.b16 %v1038
  %v1128 = vunpack.c.h.b16 %v1038
  %v1129 = vunpack.c.l.b16 %v1039
  %v1130 = vunpack.c.h.b16 %v1039
  %v1131 = vunpack.c.l.b16 %v1040
  %v1132 = vunpack.c.h.b16 %v1040
  %v1133 = vunpack.c.l.b16 %v1041
  %v1134 = vunpack.c.h.b16 %v1041
  %v1135 = vunpack.c.l.b16 %v1042
  %v1136 = vunpack.c.h.b16 %v1042
  %v1137 = vunpack.c.l.b16 %v1043
  %v1138 = vunpack.c.h.b16 %v1043
  %v1139 = vunpack.c.l.b16 %v1044
  %v1140 = vunpack.c.h.b16 %v1044
  %v1141 = vpack.c.b16 %v1081, %v1077
  %v1142 = vpack.c.b16 %v1082, %v1078
  %v1143 = vpack.c.b16 %v1083, %v1079
  %v1144 = vpack.c.b16 %v1084, %v1080
  %v1145 = vpack.c.b16 %v1089, %v1085
  %v1146 = vpack.c.b16 %v1090, %v1086
  %v1147 = vpack.c.b16 %v1091, %v1087
  %v1148 = vpack.c.b16 %v1092, %v1088
  %v1149 = vpack.c.b16 %v1097, %v1093
  %v1150 = vpack.c.b16 %v1098, %v1094
  %v1151 = vpack.c.b16 %v1099, %v1095
  %v1152 = vpack.c.b16 %v1100, %v1096
  %v1153 = vpack.c.b16 %v1105, %v1101
  %v1154 = vpack.c.b16 %v1106, %v1102
  %v1155 = vpack.c.b16 %v1107, %v1103
  %v1156 = vpack.c.b16 %v1108, %v1104
  %v1157 = vpack.c.b16 %v1113, %v1109
  %v1158 = vpack.c.b16 %v1114, %v1110
  %v1159 = vpack.c.b16 %v1115, %v1111
  %v1160 = vpack.c.b16 %v1116, %v1112
  %v1161 = vpack.c.b16 %v1121, %v1117
  %v1162 = vpack.c.b16 %v1122, %v1118
  %v1163 = vpack.c.b16 %v1123, %v1119
  %v1164 = vpack.c.b16 %v1124, %v1120
  %v1165 = vpack.c.b16 %v1129, %v1125
  %v1166 = vpack.c.b16 %v1130, %v1126
  %v1167 = vpack.c.b16 %v1131, %v1127
  %v1168 = vpack.c.b16 %v1132, %v1128
  %v1169 = vpack.c.b16 %v1137, %v1133
  %v1170 = vpack.c.b16 %v1138, %v1134
  %v1171 = vpack.c.b16 %v1139, %v1135
  %v1172 = vpack.c.b16 %v1140, %v1136
  %1205 = vmatprep.subr.bf16.mxu0 %v1142
  %1206 = vmatpush1.bf16.msra.mxu0 %v1141
  %1207 = vmatprep.subr.bf16.mxu0 %v1146
  %1208 = vmatpush1.bf16.msra.mxu0 %v1145
  %1209 = vmatprep.subr.bf16.mxu0 %v1150
  %1210 = vmatpush1.bf16.msra.mxu0 %v1149
  %1211 = vmatprep.subr.bf16.mxu0 %v1154
  %1212 = vmatpush1.bf16.msra.mxu0 %v1153
  %1213 = vmatprep.subr.bf16.mxu0 %v1158
  %1214 = vmatpush1.bf16.msra.mxu0 %v1157
  %1215 = vmatprep.subr.bf16.mxu0 %v1162
  %1216 = vmatpush1.bf16.msra.mxu0 %v1161
  %1217 = vmatprep.subr.bf16.mxu0 %v1166
  %1218 = vmatpush1.bf16.msra.mxu0 %v1165
  %1219 = vmatprep.subr.bf16.mxu0 %v1170
  %1220 = vmatpush1.bf16.msra.mxu0 %v1169
  %1221 = vmatprep.subr.bf16.mxu0 0
  %1222 = vmatpush1.bf16.msra.mxu0 0
  %1223 = vmatprep.subr.bf16.mxu0 0
  %1224 = vmatpush1.bf16.msra.mxu0 0
  %1225 = vmatprep.subr.bf16.mxu0 0
  %1226 = vmatpush1.bf16.msra.mxu0 0
  %1227 = vmatprep.subr.bf16.mxu0 0
  %1228 = vmatpush1.bf16.msra.mxu0 0
  %1229 = vmatprep.subr.bf16.mxu0 0
  %1230 = vmatpush1.bf16.msra.mxu0 0
  %1231 = vmatprep.subr.bf16.mxu0 0
  %1232 = vmatpush1.bf16.msra.mxu0 0
  %1233 = vmatprep.subr.bf16.mxu0 0
  %1234 = vmatpush1.bf16.msra.mxu0 0
  %1235 = vmatprep.subr.bf16.mxu0 0
  %1236 = vmatpush1.bf16.msra.mxu0 0
  %1237 = vmatprep.mubr.bf16.mxu0 0
  %1238 = vmatmul.mubr.bf16.gmra.mrb[0].mxu0 %v518
  %v1239 = vpop.f32.mrb[0].mxu0
  %v1240 = vadd.f32 0.0, %v1239
  %v1241 = vpop.f32.mrb[0].mxu0
  %v1242 = vadd.f32 0.0, %v1241
  %v1243 = vpop.f32.mrb[0].mxu0
  %v1244 = vpop.f32.mrb[0].mxu0
  %1245 = vdwg.mxu0
  %1246 = vmatprep.subr.bf16.mxu0 %v1144
  %1247 = vmatpush1.bf16.msra.mxu0 %v1143
  %1248 = vmatprep.subr.bf16.mxu0 %v1148
  %1249 = vmatpush1.bf16.msra.mxu0 %v1147
  %1250 = vmatprep.subr.bf16.mxu0 %v1152
  %1251 = vmatpush1.bf16.msra.mxu0 %v1151
  %1252 = vmatprep.subr.bf16.mxu0 %v1156
  %1253 = vmatpush1.bf16.msra.mxu0 %v1155
  %1254 = vmatprep.subr.bf16.mxu0 %v1160
  %1255 = vmatpush1.bf16.msra.mxu0 %v1159
  %1256 = vmatprep.subr.bf16.mxu0 %v1164
  %1257 = vmatpush1.bf16.msra.mxu0 %v1163
  %1258 = vmatprep.subr.bf16.mxu0 %v1168
  %1259 = vmatpush1.bf16.msra.mxu0 %v1167
  %1260 = vmatprep.subr.bf16.mxu0 %v1172
  %1261 = vmatpush1.bf16.msra.mxu0 %v1171
  %1262 = vmatprep.subr.bf16.mxu0 0
  %1263 = vmatpush1.bf16.msra.mxu0 0
  %1264 = vmatprep.subr.bf16.mxu0 0
  %1265 = vmatpush1.bf16.msra.mxu0 0
  %1266 = vmatprep.subr.bf16.mxu0 0
  %1267 = vmatpush1.bf16.msra.mxu0 0
  %1268 = vmatprep.subr.bf16.mxu0 0
  %1269 = vmatpush1.bf16.msra.mxu0 0
  %1270 = vmatprep.subr.bf16.mxu0 0
  %1271 = vmatpush1.bf16.msra.mxu0 0
  %1272 = vmatprep.subr.bf16.mxu0 0
  %1273 = vmatpush1.bf16.msra.mxu0 0
  %1274 = vmatprep.subr.bf16.mxu0 0
  %1275 = vmatpush1.bf16.msra.mxu0 0
  %1276 = vmatprep.subr.bf16.mxu0 0
  %1277 = vmatpush1.bf16.msra.mxu0 0
  %1278 = vmatprep.mubr.bf16.mxu0 0
  %1279 = vmatmul.mubr.bf16.gmra.mrb[0].mxu0 %v518
  %v1280 = vpop.f32.mrb[0].mxu0
  %v1281 = vadd.f32 0.0, %v1280
  %v1282 = vpop.f32.mrb[0].mxu0
  %v1283 = vadd.f32 0.0, %v1282
  %v1284 = vpop.f32.mrb[0].mxu0
  %v1285 = vpop.f32.mrb[0].mxu0
  %1286 = vdwg.mxu0
  %v1287 = vadd.f32 %v1009, %v1240
  %v1288 = vadd.f32 %v1010, %v1242
  %v1289 = vadd.f32 %v1011, %v1281
  %v1290 = vadd.f32 %v1012, %v1283
  %v1291 = vxor.u32 %v1287, 2147483648
  %v1292 = vmul.f32 %v1291, 1.442695
  %v1293 = vpow.pop %v1292
  %v1294 = vadd.f32 %v1293, 1.0
  %v1295 = vrcp.pop %v1294
  %v1296 = vmul.f32 1.0, %v1295
  %v1297 = vxor.u32 %v1288, 2147483648
  %v1298 = vmul.f32 %v1297, 1.442695
  %v1299 = vpow.pop %v1298
  %v1300 = vadd.f32 %v1299, 1.0
  %v1301 = vrcp.pop %v1300
  %v1302 = vmul.f32 1.0, %v1301
  %v1303 = vtanh.pop %v1289
  %v1304 = vxor.u32 %v1290, 2147483648
  %v1305 = vmul.f32 %v1304, 1.442695
  %v1306 = vpow.pop %v1305
  %v1307 = vadd.f32 %v1306, 1.0
  %v1308 = vrcp.pop %v1307
  %v1309 = vmul.f32 1.0, %v1308
  %v1310 = vmul.f32 %v1302, %v515
  %v1311 = vmul.f32 %v1296, %v1303
  %v1312 = vadd.f32 %v1310, %v1311
  %v1313 = vtanh.pop %v1312
  %v1314 = vmul.f32 %v1309, %v1313
  %v1315 = vpack.c.bf16 %v1314, %v1314
  loop: start=0, step=1, limit=47
  $region41: #{lstm_forward.1} parent=0 // loop_pre_header
    _
  $region42: #{lstm_forward.1} parent=0 // loop_header
    %s1317 = sphi 0, %s1321
    %p1318 = scmp.ge.s32.totalorder %s1317, 47
    %v1322 = vphi %v1315, %v2360
    %v1323 = vphi %v1312, %v2357
    %v1324 = vphi %v1008, %v2240
    %v1325 = vphi %v1006, %v2238
  $region43: #{lstm_forward.1} parent=0 // loop_header_branch
    %1320 = sbr.rel (%p1318) target = $region47
  $region44: #{lstm_forward.1} parent=0 // loop_body
    %s1326 = smul.u32 %s1317, 2
    %s1327 = sadd.s32 %s1326, 2
    %s1328 = smul.u32 %s1327, 8
    %v1329 = vpack.c.bf16 %v1324, %v1324
    %v1330 = vld [vmem:[%s4] sm:$0xff]
    %v1331 = vld [vmem:[%s4 + $0x8] sm:$0xff]
    %v1332 = vld [vmem:[%s4 + $0x10] sm:$0xff]
    %v1333 = vld [vmem:[%s4 + $0x18] sm:$0xff]
    %v1334 = vld [vmem:[%s4 + $0x20] sm:$0xff]
    %v1335 = vld [vmem:[%s4 + $0x28] sm:$0xff]
    %v1336 = vld [vmem:[%s4 + $0x30] sm:$0xff]
    %v1337 = vld [vmem:[%s4 + $0x38] sm:$0xff]
    %v1338 = vld [vmem:[%s4 + $0x40] sm:$0xff]
    %v1339 = vld [vmem:[%s4 + $0x48] sm:$0xff]
    %v1340 = vld [vmem:[%s4 + $0x50] sm:$0xff]
    %v1341 = vld [vmem:[%s4 + $0x58] sm:$0xff]
    %v1342 = vld [vmem:[%s4 + $0x60] sm:$0xff]
    %v1343 = vld [vmem:[%s4 + $0x68] sm:$0xff]
    %v1344 = vld [vmem:[%s4 + $0x70] sm:$0xff]
    %v1345 = vld [vmem:[%s4 + $0x78] sm:$0xff]
    %v1346 = vld [vmem:[%s4 + $0x80] sm:$0xff]
    %v1347 = vld [vmem:[%s4 + $0x88] sm:$0xff]
    %v1348 = vld [vmem:[%s4 + $0x90] sm:$0xff]
    %v1349 = vld [vmem:[%s4 + $0x98] sm:$0xff]
    %v1350 = vld [vmem:[%s4 + $0xa0] sm:$0xff]
    %v1351 = vld [vmem:[%s4 + $0xa8] sm:$0xff]
    %v1352 = vld [vmem:[%s4 + $0xb0] sm:$0xff]
    %v1353 = vld [vmem:[%s4 + $0xb8] sm:$0xff]
    %v1354 = vld [vmem:[%s4 + $0xc0] sm:$0xff]
    %v1355 = vld [vmem:[%s4 + $0xc8] sm:$0xff]
    %v1356 = vld [vmem:[%s4 + $0xd0] sm:$0xff]
    %v1357 = vld [vmem:[%s4 + $0xd8] sm:$0xff]
    %v1358 = vld [vmem:[%s4 + $0xe0] sm:$0xff]
    %v1359 = vld [vmem:[%s4 + $0xe8] sm:$0xff]
    %v1360 = vld [vmem:[%s4 + $0xf0] sm:$0xff]
    %v1361 = vld [vmem:[%s4 + $0xf8] sm:$0xff]
    %v1362 = vld [vmem:[%s4 + $0x100] sm:$0xff]
    %v1363 = vld [vmem:[%s4 + $0x108] sm:$0xff]
    %v1364 = vld [vmem:[%s4 + $0x110] sm:$0xff]
    %v1365 = vld [vmem:[%s4 + $0x118] sm:$0xff]
    %v1366 = vld [vmem:[%s4 + $0x120] sm:$0xff]
    %v1367 = vld [vmem:[%s4 + $0x128] sm:$0xff]
    %v1368 = vld [vmem:[%s4 + $0x130] sm:$0xff]
    %v1369 = vld [vmem:[%s4 + $0x138] sm:$0xff]
    %v1370 = vld [vmem:[%s4 + $0x140] sm:$0xff]
    %v1371 = vld [vmem:[%s4 + $0x148] sm:$0xff]
    %v1372 = vld [vmem:[%s4 + $0x150] sm:$0xff]
    %v1373 = vld [vmem:[%s4 + $0x158] sm:$0xff]
    %v1374 = vld [vmem:[%s4 + $0x160] sm:$0xff]
    %v1375 = vld [vmem:[%s4 + $0x168] sm:$0xff]
    %v1376 = vld [vmem:[%s4 + $0x170] sm:$0xff]
    %v1377 = vld [vmem:[%s4 + $0x178] sm:$0xff]
    %v1378 = vld [vmem:[%s4 + $0x180] sm:$0xff]
    %v1379 = vld [vmem:[%s4 + $0x188] sm:$0xff]
    %v1380 = vld [vmem:[%s4 + $0x190] sm:$0xff]
    %v1381 = vld [vmem:[%s4 + $0x198] sm:$0xff]
    %v1382 = vld [vmem:[%s4 + $0x1a0] sm:$0xff]
    %v1383 = vld [vmem:[%s4 + $0x1a8] sm:$0xff]
    %v1384 = vld [vmem:[%s4 + $0x1b0] sm:$0xff]
    %v1385 = vld [vmem:[%s4 + $0x1b8] sm:$0xff]
    %v1386 = vld [vmem:[%s4 + $0x1c0] sm:$0xff]
    %v1387 = vld [vmem:[%s4 + $0x1c8] sm:$0xff]
    %v1388 = vld [vmem:[%s4 + $0x1d0] sm:$0xff]
    %v1389 = vld [vmem:[%s4 + $0x1d8] sm:$0xff]
    %v1390 = vld [vmem:[%s4 + $0x1e0] sm:$0xff]
    %v1391 = vld [vmem:[%s4 + $0x1e8] sm:$0xff]
    %v1392 = vld [vmem:[%s4 + $0x1f0] sm:$0xff]
    %v1393 = vld [vmem:[%s4 + $0x1f8] sm:$0xff]
    %v1458 = vunpack.c.l.b16 %v1330
    %v1459 = vunpack.c.h.b16 %v1330
    %v1460 = vunpack.c.l.b16 %v1331
    %v1461 = vunpack.c.h.b16 %v1331
    %v1462 = vunpack.c.l.b16 %v1332
    %v1463 = vunpack.c.h.b16 %v1332
    %v1464 = vunpack.c.l.b16 %v1333
    %v1465 = vunpack.c.h.b16 %v1333
    %v1466 = vunpack.c.l.b16 %v1334
    %v1467 = vunpack.c.h.b16 %v1334
    %v1468 = vunpack.c.l.b16 %v1335
    %v1469 = vunpack.c.h.b16 %v1335
    %v1470 = vunpack.c.l.b16 %v1336
    %v1471 = vunpack.c.h.b16 %v1336
    %v1472 = vunpack.c.l.b16 %v1337
    %v1473 = vunpack.c.h.b16 %v1337
    %v1474 = vunpack.c.l.b16 %v1338
    %v1475 = vunpack.c.h.b16 %v1338
    %v1476 = vunpack.c.l.b16 %v1339
    %v1477 = vunpack.c.h.b16 %v1339
    %v1478 = vunpack.c.l.b16 %v1340
    %v1479 = vunpack.c.h.b16 %v1340
    %v1480 = vunpack.c.l.b16 %v1341
    %v1481 = vunpack.c.h.b16 %v1341
    %v1482 = vunpack.c.l.b16 %v1342
    %v1483 = vunpack.c.h.b16 %v1342
    %v1484 = vunpack.c.l.b16 %v1343
    %v1485 = vunpack.c.h.b16 %v1343
    %v1486 = vunpack.c.l.b16 %v1344
    %v1487 = vunpack.c.h.b16 %v1344
    %v1488 = vunpack.c.l.b16 %v1345
    %v1489 = vunpack.c.h.b16 %v1345
    %v1490 = vunpack.c.l.b16 %v1346
    %v1491 = vunpack.c.h.b16 %v1346
    %v1492 = vunpack.c.l.b16 %v1347
    %v1493 = vunpack.c.h.b16 %v1347
    %v1494 = vunpack.c.l.b16 %v1348
    %v1495 = vunpack.c.h.b16 %v1348
    %v1496 = vunpack.c.l.b16 %v1349
    %v1497 = vunpack.c.h.b16 %v1349
    %v1498 = vunpack.c.l.b16 %v1350
    %v1499 = vunpack.c.h.b16 %v1350
    %v1500 = vunpack.c.l.b16 %v1351
    %v1501 = vunpack.c.h.b16 %v1351
    %v1502 = vunpack.c.l.b16 %v1352
    %v1503 = vunpack.c.h.b16 %v1352
    %v1504 = vunpack.c.l.b16 %v1353
    %v1505 = vunpack.c.h.b16 %v1353
    %v1506 = vunpack.c.l.b16 %v1354
    %v1507 = vunpack.c.h.b16 %v1354
    %v1508 = vunpack.c.l.b16 %v1355
    %v1509 = vunpack.c.h.b16 %v1355
    %v1510 = vunpack.c.l.b16 %v1356
    %v1511 = vunpack.c.h.b16 %v1356
    %v1512 = vunpack.c.l.b16 %v1357
    %v1513 = vunpack.c.h.b16 %v1357
    %v1514 = vunpack.c.l.b16 %v1358
    %v1515 = vunpack.c.h.b16 %v1358
    %v1516 = vunpack.c.l.b16 %v1359
    %v1517 = vunpack.c.h.b16 %v1359
    %v1518 = vunpack.c.l.b16 %v1360
    %v1519 = vunpack.c.h.b16 %v1360
    %v1520 = vunpack.c.l.b16 %v1361
    %v1521 = vunpack.c.h.b16 %v1361
    %v1522 = vunpack.c.l.b16 %v1362
    %v1523 = vunpack.c.h.b16 %v1362
    %v1524 = vunpack.c.l.b16 %v1363
    %v1525 = vunpack.c.h.b16 %v1363
    %v1526 = vunpack.c.l.b16 %v1364
    %v1527 = vunpack.c.h.b16 %v1364
    %v1528 = vunpack.c.l.b16 %v1365
    %v1529 = vunpack.c.h.b16 %v1365
    %v1530 = vunpack.c.l.b16 %v1366
    %v1531 = vunpack.c.h.b16 %v1366
    %v1532 = vunpack.c.l.b16 %v1367
    %v1533 = vunpack.c.h.b16 %v1367
    %v1534 = vunpack.c.l.b16 %v1368
    %v1535 = vunpack.c.h.b16 %v1368
    %v1536 = vunpack.c.l.b16 %v1369
    %v1537 = vunpack.c.h.b16 %v1369
    %v1538 = vunpack.c.l.b16 %v1370
    %v1539 = vunpack.c.h.b16 %v1370
    %v1540 = vunpack.c.l.b16 %v1371
    %v1541 = vunpack.c.h.b16 %v1371
    %v1542 = vunpack.c.l.b16 %v1372
    %v1543 = vunpack.c.h.b16 %v1372
    %v1544 = vunpack.c.l.b16 %v1373
    %v1545 = vunpack.c.h.b16 %v1373
    %v1546 = vunpack.c.l.b16 %v1374
    %v1547 = vunpack.c.h.b16 %v1374
    %v1548 = vunpack.c.l.b16 %v1375
    %v1549 = vunpack.c.h.b16 %v1375
    %v1550 = vunpack.c.l.b16 %v1376
    %v1551 = vunpack.c.h.b16 %v1376
    %v1552 = vunpack.c.l.b16 %v1377
    %v1553 = vunpack.c.h.b16 %v1377
    %v1554 = vunpack.c.l.b16 %v1378
    %v1555 = vunpack.c.h.b16 %v1378
    %v1556 = vunpack.c.l.b16 %v1379
    %v1557 = vunpack.c.h.b16 %v1379
    %v1558 = vunpack.c.l.b16 %v1380
    %v1559 = vunpack.c.h.b16 %v1380
    %v1560 = vunpack.c.l.b16 %v1381
    %v1561 = vunpack.c.h.b16 %v1381
    %v1562 = vunpack.c.l.b16 %v1382
    %v1563 = vunpack.c.h.b16 %v1382
    %v1564 = vunpack.c.l.b16 %v1383
    %v1565 = vunpack.c.h.b16 %v1383
    %v1566 = vunpack.c.l.b16 %v1384
    %v1567 = vunpack.c.h.b16 %v1384
    %v1568 = vunpack.c.l.b16 %v1385
    %v1569 = vunpack.c.h.b16 %v1385
    %v1570 = vunpack.c.l.b16 %v1386
    %v1571 = vunpack.c.h.b16 %v1386
    %v1572 = vunpack.c.l.b16 %v1387
    %v1573 = vunpack.c.h.b16 %v1387
    %v1574 = vunpack.c.l.b16 %v1388
    %v1575 = vunpack.c.h.b16 %v1388
    %v1576 = vunpack.c.l.b16 %v1389
    %v1577 = vunpack.c.h.b16 %v1389
    %v1578 = vunpack.c.l.b16 %v1390
    %v1579 = vunpack.c.h.b16 %v1390
    %v1580 = vunpack.c.l.b16 %v1391
    %v1581 = vunpack.c.h.b16 %v1391
    %v1582 = vunpack.c.l.b16 %v1392
    %v1583 = vunpack.c.h.b16 %v1392
    %v1584 = vunpack.c.l.b16 %v1393
    %v1585 = vunpack.c.h.b16 %v1393
    %v1586 = vpack.c.b16 %v1462, %v1458
    %v1587 = vpack.c.b16 %v1463, %v1459
    %v1588 = vpack.c.b16 %v1464, %v1460
    %v1589 = vpack.c.b16 %v1465, %v1461
    %v1590 = vpack.c.b16 %v1470, %v1466
    %v1591 = vpack.c.b16 %v1471, %v1467
    %v1592 = vpack.c.b16 %v1472, %v1468
    %v1593 = vpack.c.b16 %v1473, %v1469
    %v1594 = vpack.c.b16 %v1478, %v1474
    %v1595 = vpack.c.b16 %v1479, %v1475
    %v1596 = vpack.c.b16 %v1480, %v1476
    %v1597 = vpack.c.b16 %v1481, %v1477
    %v1598 = vpack.c.b16 %v1486, %v1482
    %v1599 = vpack.c.b16 %v1487, %v1483
    %v1600 = vpack.c.b16 %v1488, %v1484
    %v1601 = vpack.c.b16 %v1489, %v1485
    %v1602 = vpack.c.b16 %v1494, %v1490
    %v1603 = vpack.c.b16 %v1495, %v1491
    %v1604 = vpack.c.b16 %v1496, %v1492
    %v1605 = vpack.c.b16 %v1497, %v1493
    %v1606 = vpack.c.b16 %v1502, %v1498
    %v1607 = vpack.c.b16 %v1503, %v1499
    %v1608 = vpack.c.b16 %v1504, %v1500
    %v1609 = vpack.c.b16 %v1505, %v1501
    %v1610 = vpack.c.b16 %v1510, %v1506
    %v1611 = vpack.c.b16 %v1511, %v1507
    %v1612 = vpack.c.b16 %v1512, %v1508
    %v1613 = vpack.c.b16 %v1513, %v1509
    %v1614 = vpack.c.b16 %v1518, %v1514
    %v1615 = vpack.c.b16 %v1519, %v1515
    %v1616 = vpack.c.b16 %v1520, %v1516
    %v1617 = vpack.c.b16 %v1521, %v1517
    %v1618 = vpack.c.b16 %v1526, %v1522
    %v1619 = vpack.c.b16 %v1527, %v1523
    %v1620 = vpack.c.b16 %v1528, %v1524
    %v1621 = vpack.c.b16 %v1529, %v1525
    %v1622 = vpack.c.b16 %v1534, %v1530
    %v1623 = vpack.c.b16 %v1535, %v1531
    %v1624 = vpack.c.b16 %v1536, %v1532
    %v1625 = vpack.c.b16 %v1537, %v1533
    %v1626 = vpack.c.b16 %v1542, %v1538
    %v1627 = vpack.c.b16 %v1543, %v1539
    %v1628 = vpack.c.b16 %v1544, %v1540
    %v1629 = vpack.c.b16 %v1545, %v1541
    %v1630 = vpack.c.b16 %v1550, %v1546
    %v1631 = vpack.c.b16 %v1551, %v1547
    %v1632 = vpack.c.b16 %v1552, %v1548
    %v1633 = vpack.c.b16 %v1553, %v1549
    %v1634 = vpack.c.b16 %v1558, %v1554
    %v1635 = vpack.c.b16 %v1559, %v1555
    %v1636 = vpack.c.b16 %v1560, %v1556
    %v1637 = vpack.c.b16 %v1561, %v1557
    %v1638 = vpack.c.b16 %v1566, %v1562
    %v1639 = vpack.c.b16 %v1567, %v1563
    %v1640 = vpack.c.b16 %v1568, %v1564
    %v1641 = vpack.c.b16 %v1569, %v1565
    %v1642 = vpack.c.b16 %v1574, %v1570
    %v1643 = vpack.c.b16 %v1575, %v1571
    %v1644 = vpack.c.b16 %v1576, %v1572
    %v1645 = vpack.c.b16 %v1577, %v1573
    %v1646 = vpack.c.b16 %v1582, %v1578
    %v1647 = vpack.c.b16 %v1583, %v1579
    %v1648 = vpack.c.b16 %v1584, %v1580
    %v1649 = vpack.c.b16 %v1585, %v1581
    %1714 = vmatprep.subr.bf16.mxu0 %v1587
    %1715 = vmatpush1.bf16.msra.mxu0 %v1586
    %1716 = vmatprep.subr.bf16.mxu0 %v1591
    %1717 = vmatpush1.bf16.msra.mxu0 %v1590
    %1718 = vmatprep.subr.bf16.mxu0 %v1595
    %1719 = vmatpush1.bf16.msra.mxu0 %v1594
    %1720 = vmatprep.subr.bf16.mxu0 %v1599
    %1721 = vmatpush1.bf16.msra.mxu0 %v1598
    %1722 = vmatprep.subr.bf16.mxu0 %v1603
    %1723 = vmatpush1.bf16.msra.mxu0 %v1602
    %1724 = vmatprep.subr.bf16.mxu0 %v1607
    %1725 = vmatpush1.bf16.msra.mxu0 %v1606
    %1726 = vmatprep.subr.bf16.mxu0 %v1611
    %1727 = vmatpush1.bf16.msra.mxu0 %v1610
    %1728 = vmatprep.subr.bf16.mxu0 %v1615
    %1729 = vmatpush1.bf16.msra.mxu0 %v1614
    %1730 = vmatprep.subr.bf16.mxu0 %v1619
    %1731 = vmatpush1.bf16.msra.mxu0 %v1618
    %1732 = vmatprep.subr.bf16.mxu0 %v1623
    %1733 = vmatpush1.bf16.msra.mxu0 %v1622
    %1734 = vmatprep.subr.bf16.mxu0 %v1627
    %1735 = vmatpush1.bf16.msra.mxu0 %v1626
    %1736 = vmatprep.subr.bf16.mxu0 %v1631
    %1737 = vmatpush1.bf16.msra.mxu0 %v1630
    %1738 = vmatprep.subr.bf16.mxu0 %v1635
    %1739 = vmatpush1.bf16.msra.mxu0 %v1634
    %1740 = vmatprep.subr.bf16.mxu0 %v1639
    %1741 = vmatpush1.bf16.msra.mxu0 %v1638
    %1742 = vmatprep.subr.bf16.mxu0 %v1643
    %1743 = vmatpush1.bf16.msra.mxu0 %v1642
    %1744 = vmatprep.subr.bf16.mxu0 %v1647
    %1745 = vmatpush1.bf16.msra.mxu0 %v1646
    %1746 = vmatprep.mubr.bf16.mxu0 %v1329
    %1747 = vmatmul.mubr.bf16.gmra.mrb[0].mxu0 %v1322
    %v1748 = vpop.f32.mrb[0].mxu0
    %v1749 = vadd.f32 %v473, %v1748
    %v1750 = vpop.f32.mrb[0].mxu0
    %v1751 = vadd.f32 %v477, %v1750
    %v1752 = vpop.f32.mrb[0].mxu0
    %v1753 = vpop.f32.mrb[0].mxu0
    %1754 = vdwg.mxu0
    %1755 = vmatprep.subr.bf16.mxu0 %v1589
    %1756 = vmatpush1.bf16.msra.mxu0 %v1588
    %1757 = vmatprep.subr.bf16.mxu0 %v1593
    %1758 = vmatpush1.bf16.msra.mxu0 %v1592
    %1759 = vmatprep.subr.bf16.mxu0 %v1597
    %1760 = vmatpush1.bf16.msra.mxu0 %v1596
    %1761 = vmatprep.subr.bf16.mxu0 %v1601
    %1762 = vmatpush1.bf16.msra.mxu0 %v1600
    %1763 = vmatprep.subr.bf16.mxu0 %v1605
    %1764 = vmatpush1.bf16.msra.mxu0 %v1604
    %1765 = vmatprep.subr.bf16.mxu0 %v1609
    %1766 = vmatpush1.bf16.msra.mxu0 %v1608
    %1767 = vmatprep.subr.bf16.mxu0 %v1613
    %1768 = vmatpush1.bf16.msra.mxu0 %v1612
    %1769 = vmatprep.subr.bf16.mxu0 %v1617
    %1770 = vmatpush1.bf16.msra.mxu0 %v1616
    %1771 = vmatprep.subr.bf16.mxu0 %v1621
    %1772 = vmatpush1.bf16.msra.mxu0 %v1620
    %1773 = vmatprep.subr.bf16.mxu0 %v1625
    %1774 = vmatpush1.bf16.msra.mxu0 %v1624
    %1775 = vmatprep.subr.bf16.mxu0 %v1629
    %1776 = vmatpush1.bf16.msra.mxu0 %v1628
    %1777 = vmatprep.subr.bf16.mxu0 %v1633
    %1778 = vmatpush1.bf16.msra.mxu0 %v1632
    %1779 = vmatprep.subr.bf16.mxu0 %v1637
    %1780 = vmatpush1.bf16.msra.mxu0 %v1636
    %1781 = vmatprep.subr.bf16.mxu0 %v1641
    %1782 = vmatpush1.bf16.msra.mxu0 %v1640
    %1783 = vmatprep.subr.bf16.mxu0 %v1645
    %1784 = vmatpush1.bf16.msra.mxu0 %v1644
    %1785 = vmatprep.subr.bf16.mxu0 %v1649
    %1786 = vmatpush1.bf16.msra.mxu0 %v1648
    %1787 = vmatprep.mubr.bf16.mxu0 %v1329
    %1788 = vmatmul.mubr.bf16.gmra.mrb[0].mxu0 %v1322
    %v1789 = vpop.f32.mrb[0].mxu0
    %v1790 = vadd.f32 %v481, %v1789
    %v1791 = vpop.f32.mrb[0].mxu0
    %v1792 = vadd.f32 %v485, %v1791
    %v1793 = vpop.f32.mrb[0].mxu0
    %v1794 = vpop.f32.mrb[0].mxu0
    %1795 = vdwg.mxu0
    %v1796 = vxor.u32 %v1749, 2147483648
    %v1797 = vmul.f32 %v1796, 1.442695
    %v1798 = vpow.pop %v1797
    %v1799 = vadd.f32 %v1798, 1.0
    %v1800 = vrcp.pop %v1799
    %v1801 = vmul.f32 1.0, %v1800
    %v1802 = vxor.u32 %v1751, 2147483648
    %v1803 = vmul.f32 %v1802, 1.442695
    %v1804 = vpow.pop %v1803
    %v1805 = vadd.f32 %v1804, 1.0
    %v1806 = vrcp.pop %v1805
    %v1807 = vmul.f32 1.0, %v1806
    %v1808 = vtanh.pop %v1790
    %v1809 = vxor.u32 %v1792, 2147483648
    %v1810 = vmul.f32 %v1809, 1.442695
    %v1811 = vpow.pop %v1810
    %v1812 = vadd.f32 %v1811, 1.0
    %v1813 = vrcp.pop %v1812
    %v1814 = vmul.f32 1.0, %v1813
    %v1815 = vmul.f32 %v1807, %v1325
    %v1816 = vmul.f32 %v1801, %v1808
    %v1817 = vadd.f32 %v1815, %v1816
    %v1818 = vtanh.pop %v1817
    %v1819 = vmul.f32 %v1814, %v1818
    %s1820 = sshra.s32 %s1328, 3
    %s1821 = sand.u32 %s1328, 7
    %s1822 = smul.u32 %s1820, 4
    %s1823 = smul.addr %s1822, 8
    %s1824 = scalar_lea.vmem [#allocation2], %s1823
    %v1825 = vld [vmem:[%s1824] sm:$0xff]
    %v1826 = vld [vmem:[%s1824 + $0x8] sm:$0xff]
    %v1827 = vld [vmem:[%s1824 + $0x10] sm:$0xff]
    %v1828 = vld [vmem:[%s1824 + $0x18] sm:$0xff]
    %v1829 = vld [vmem:[%s2] sm:$0xff]
    %v1830 = vld [vmem:[%s2 + $0x8] sm:$0xff]
    %v1831 = vld [vmem:[%s2 + $0x10] sm:$0xff]
    %v1832 = vld [vmem:[%s2 + $0x18] sm:$0xff]
    %v1833 = vld [vmem:[%s2 + $0x20] sm:$0xff]
    %v1834 = vld [vmem:[%s2 + $0x28] sm:$0xff]
    %v1835 = vld [vmem:[%s2 + $0x30] sm:$0xff]
    %v1836 = vld [vmem:[%s2 + $0x38] sm:$0xff]
    %v1837 = vld [vmem:[%s2 + $0x40] sm:$0xff]
    %v1838 = vld [vmem:[%s2 + $0x48] sm:$0xff]
    %v1839 = vld [vmem:[%s2 + $0x50] sm:$0xff]
    %v1840 = vld [vmem:[%s2 + $0x58] sm:$0xff]
    %v1841 = vld [vmem:[%s2 + $0x60] sm:$0xff]
    %v1842 = vld [vmem:[%s2 + $0x68] sm:$0xff]
    %v1843 = vld [vmem:[%s2 + $0x70] sm:$0xff]
    %v1844 = vld [vmem:[%s2 + $0x78] sm:$0xff]
    %v1845 = vld [vmem:[%s2 + $0x80] sm:$0xff]
    %v1846 = vld [vmem:[%s2 + $0x88] sm:$0xff]
    %v1847 = vld [vmem:[%s2 + $0x90] sm:$0xff]
    %v1848 = vld [vmem:[%s2 + $0x98] sm:$0xff]
    %v1849 = vld [vmem:[%s2 + $0xa0] sm:$0xff]
    %v1850 = vld [vmem:[%s2 + $0xa8] sm:$0xff]
    %v1851 = vld [vmem:[%s2 + $0xb0] sm:$0xff]
    %v1852 = vld [vmem:[%s2 + $0xb8] sm:$0xff]
    %v1853 = vld [vmem:[%s2 + $0xc0] sm:$0xff]
    %v1854 = vld [vmem:[%s2 + $0xc8] sm:$0xff]
    %v1855 = vld [vmem:[%s2 + $0xd0] sm:$0xff]
    %v1856 = vld [vmem:[%s2 + $0xd8] sm:$0xff]
    %v1857 = vld [vmem:[%s2 + $0xe0] sm:$0xff]
    %v1858 = vld [vmem:[%s2 + $0xe8] sm:$0xff]
    %v1859 = vld [vmem:[%s2 + $0xf0] sm:$0xff]
    %v1860 = vld [vmem:[%s2 + $0xf8] sm:$0xff]
    %v1893 = vunpack.c.l.b16 %v1829
    %v1894 = vunpack.c.h.b16 %v1829
    %v1895 = vunpack.c.l.b16 %v1830
    %v1896 = vunpack.c.h.b16 %v1830
    %v1897 = vunpack.c.l.b16 %v1831
    %v1898 = vunpack.c.h.b16 %v1831
    %v1899 = vunpack.c.l.b16 %v1832
    %v1900 = vunpack.c.h.b16 %v1832
    %v1901 = vunpack.c.l.b16 %v1833
    %v1902 = vunpack.c.h.b16 %v1833
    %v1903 = vunpack.c.l.b16 %v1834
    %v1904 = vunpack.c.h.b16 %v1834
    %v1905 = vunpack.c.l.b16 %v1835
    %v1906 = vunpack.c.h.b16 %v1835
    %v1907 = vunpack.c.l.b16 %v1836
    %v1908 = vunpack.c.h.b16 %v1836
    %v1909 = vunpack.c.l.b16 %v1837
    %v1910 = vunpack.c.h.b16 %v1837
    %v1911 = vunpack.c.l.b16 %v1838
    %v1912 = vunpack.c.h.b16 %v1838
    %v1913 = vunpack.c.l.b16 %v1839
    %v1914 = vunpack.c.h.b16 %v1839
    %v1915 = vunpack.c.l.b16 %v1840
    %v1916 = vunpack.c.h.b16 %v1840
    %v1917 = vunpack.c.l.b16 %v1841
    %v1918 = vunpack.c.h.b16 %v1841
    %v1919 = vunpack.c.l.b16 %v1842
    %v1920 = vunpack.c.h.b16 %v1842
    %v1921 = vunpack.c.l.b16 %v1843
    %v1922 = vunpack.c.h.b16 %v1843
    %v1923 = vunpack.c.l.b16 %v1844
    %v1924 = vunpack.c.h.b16 %v1844
    %v1925 = vunpack.c.l.b16 %v1845
    %v1926 = vunpack.c.h.b16 %v1845
    %v1927 = vunpack.c.l.b16 %v1846
    %v1928 = vunpack.c.h.b16 %v1846
    %v1929 = vunpack.c.l.b16 %v1847
    %v1930 = vunpack.c.h.b16 %v1847
    %v1931 = vunpack.c.l.b16 %v1848
    %v1932 = vunpack.c.h.b16 %v1848
    %v1933 = vunpack.c.l.b16 %v1849
    %v1934 = vunpack.c.h.b16 %v1849
    %v1935 = vunpack.c.l.b16 %v1850
    %v1936 = vunpack.c.h.b16 %v1850
    %v1937 = vunpack.c.l.b16 %v1851
    %v1938 = vunpack.c.h.b16 %v1851
    %v1939 = vunpack.c.l.b16 %v1852
    %v1940 = vunpack.c.h.b16 %v1852
    %v1941 = vunpack.c.l.b16 %v1853
    %v1942 = vunpack.c.h.b16 %v1853
    %v1943 = vunpack.c.l.b16 %v1854
    %v1944 = vunpack.c.h.b16 %v1854
    %v1945 = vunpack.c.l.b16 %v1855
    %v1946 = vunpack.c.h.b16 %v1855
    %v1947 = vunpack.c.l.b16 %v1856
    %v1948 = vunpack.c.h.b16 %v1856
    %v1949 = vunpack.c.l.b16 %v1857
    %v1950 = vunpack.c.h.b16 %v1857
    %v1951 = vunpack.c.l.b16 %v1858
    %v1952 = vunpack.c.h.b16 %v1858
    %v1953 = vunpack.c.l.b16 %v1859
    %v1954 = vunpack.c.h.b16 %v1859
    %v1955 = vunpack.c.l.b16 %v1860
    %v1956 = vunpack.c.h.b16 %v1860
    %v1957 = vpack.c.b16 %v1897, %v1893
    %v1958 = vpack.c.b16 %v1898, %v1894
    %v1959 = vpack.c.b16 %v1899, %v1895
    %v1960 = vpack.c.b16 %v1900, %v1896
    %v1961 = vpack.c.b16 %v1905, %v1901
    %v1962 = vpack.c.b16 %v1906, %v1902
    %v1963 = vpack.c.b16 %v1907, %v1903
    %v1964 = vpack.c.b16 %v1908, %v1904
    %v1965 = vpack.c.b16 %v1913, %v1909
    %v1966 = vpack.c.b16 %v1914, %v1910
    %v1967 = vpack.c.b16 %v1915, %v1911
    %v1968 = vpack.c.b16 %v1916, %v1912
    %v1969 = vpack.c.b16 %v1921, %v1917
    %v1970 = vpack.c.b16 %v1922, %v1918
    %v1971 = vpack.c.b16 %v1923, %v1919
    %v1972 = vpack.c.b16 %v1924, %v1920
    %v1973 = vpack.c.b16 %v1929, %v1925
    %v1974 = vpack.c.b16 %v1930, %v1926
    %v1975 = vpack.c.b16 %v1931, %v1927
    %v1976 = vpack.c.b16 %v1932, %v1928
    %v1977 = vpack.c.b16 %v1937, %v1933
    %v1978 = vpack.c.b16 %v1938, %v1934
    %v1979 = vpack.c.b16 %v1939, %v1935
    %v1980 = vpack.c.b16 %v1940, %v1936
    %v1981 = vpack.c.b16 %v1945, %v1941
    %v1982 = vpack.c.b16 %v1946, %v1942
    %v1983 = vpack.c.b16 %v1947, %v1943
    %v1984 = vpack.c.b16 %v1948, %v1944
    %v1985 = vpack.c.b16 %v1953, %v1949
    %v1986 = vpack.c.b16 %v1954, %v1950
    %v1987 = vpack.c.b16 %v1955, %v1951
    %v1988 = vpack.c.b16 %v1956, %v1952
    %2021 = vmatprep.subr.bf16.mxu0 %v1958
    %2022 = vmatpush1.bf16.msra.mxu0 %v1957
    %2023 = vmatprep.subr.bf16.mxu0 %v1962
    %2024 = vmatpush1.bf16.msra.mxu0 %v1961
    %2025 = vmatprep.subr.bf16.mxu0 %v1966
    %2026 = vmatpush1.bf16.msra.mxu0 %v1965
    %2027 = vmatprep.subr.bf16.mxu0 %v1970
    %2028 = vmatpush1.bf16.msra.mxu0 %v1969
    %2029 = vmatprep.subr.bf16.mxu0 %v1974
    %2030 = vmatpush1.bf16.msra.mxu0 %v1973
    %2031 = vmatprep.subr.bf16.mxu0 %v1978
    %2032 = vmatpush1.bf16.msra.mxu0 %v1977
    %2033 = vmatprep.subr.bf16.mxu0 %v1982
    %2034 = vmatpush1.bf16.msra.mxu0 %v1981
    %2035 = vmatprep.subr.bf16.mxu0 %v1986
    %2036 = vmatpush1.bf16.msra.mxu0 %v1985
    %2037 = vmatprep.subr.bf16.mxu0 0
    %2038 = vmatpush1.bf16.msra.mxu0 0
    %2039 = vmatprep.subr.bf16.mxu0 0
    %2040 = vmatpush1.bf16.msra.mxu0 0
    %2041 = vmatprep.subr.bf16.mxu0 0
    %2042 = vmatpush1.bf16.msra.mxu0 0
    %2043 = vmatprep.subr.bf16.mxu0 0
    %2044 = vmatpush1.bf16.msra.mxu0 0
    %2045 = vmatprep.subr.bf16.mxu0 0
    %2046 = vmatpush1.bf16.msra.mxu0 0
    %2047 = vmatprep.subr.bf16.mxu0 0
    %2048 = vmatpush1.bf16.msra.mxu0 0
    %2049 = vmatprep.subr.bf16.mxu0 0
    %2050 = vmatpush1.bf16.msra.mxu0 0
    %2051 = vmatprep.subr.bf16.mxu0 0
    %2052 = vmatpush1.bf16.msra.mxu0 0
    %2053 = vmatprep.mubr.bf16.mxu0 0
    %2054 = vmatmul.mubr.bf16.gmra.mrb[0].mxu0 %v1322
    %v2055 = vpop.f32.mrb[0].mxu0
    %v2056 = vadd.f32 0.0, %v2055
    %v2057 = vpop.f32.mrb[0].mxu0
    %v2058 = vadd.f32 0.0, %v2057
    %v2059 = vpop.f32.mrb[0].mxu0
    %v2060 = vpop.f32.mrb[0].mxu0
    %2061 = vdwg.mxu0
    %2062 = vmatprep.subr.bf16.mxu0 %v1960
    %2063 = vmatpush1.bf16.msra.mxu0 %v1959
    %2064 = vmatprep.subr.bf16.mxu0 %v1964
    %2065 = vmatpush1.bf16.msra.mxu0 %v1963
    %2066 = vmatprep.subr.bf16.mxu0 %v1968
    %2067 = vmatpush1.bf16.msra.mxu0 %v1967
    %2068 = vmatprep.subr.bf16.mxu0 %v1972
    %2069 = vmatpush1.bf16.msra.mxu0 %v1971
    %2070 = vmatprep.subr.bf16.mxu0 %v1976
    %2071 = vmatpush1.bf16.msra.mxu0 %v1975
    %2072 = vmatprep.subr.bf16.mxu0 %v1980
    %2073 = vmatpush1.bf16.msra.mxu0 %v1979
    %2074 = vmatprep.subr.bf16.mxu0 %v1984
    %2075 = vmatpush1.bf16.msra.mxu0 %v1983
    %2076 = vmatprep.subr.bf16.mxu0 %v1988
    %2077 = vmatpush1.bf16.msra.mxu0 %v1987
    %2078 = vmatprep.subr.bf16.mxu0 0
    %2079 = vmatpush1.bf16.msra.mxu0 0
    %2080 = vmatprep.subr.bf16.mxu0 0
    %2081 = vmatpush1.bf16.msra.mxu0 0
    %2082 = vmatprep.subr.bf16.mxu0 0
    %2083 = vmatpush1.bf16.msra.mxu0 0
    %2084 = vmatprep.subr.bf16.mxu0 0
    %2085 = vmatpush1.bf16.msra.mxu0 0
    %2086 = vmatprep.subr.bf16.mxu0 0
    %2087 = vmatpush1.bf16.msra.mxu0 0
    %2088 = vmatprep.subr.bf16.mxu0 0
    %2089 = vmatpush1.bf16.msra.mxu0 0
    %2090 = vmatprep.subr.bf16.mxu0 0
    %2091 = vmatpush1.bf16.msra.mxu0 0
    %2092 = vmatprep.subr.bf16.mxu0 0
    %2093 = vmatpush1.bf16.msra.mxu0 0
    %2094 = vmatprep.mubr.bf16.mxu0 0
    %2095 = vmatmul.mubr.bf16.gmra.mrb[0].mxu0 %v1322
    %v2096 = vpop.f32.mrb[0].mxu0
    %v2097 = vadd.f32 0.0, %v2096
    %v2098 = vpop.f32.mrb[0].mxu0
    %v2099 = vadd.f32 0.0, %v2098
    %v2100 = vpop.f32.mrb[0].mxu0
    %v2101 = vpop.f32.mrb[0].mxu0
    %2102 = vdwg.mxu0
    %v2103 = vadd.f32 %v1825, %v2056
    %v2104 = vadd.f32 %v1826, %v2058
    %v2105 = vadd.f32 %v1827, %v2097
    %v2106 = vadd.f32 %v1828, %v2099
    %v2107 = vxor.u32 %v2103, 2147483648
    %v2108 = vmul.f32 %v2107, 1.442695
    %v2109 = vpow.pop %v2108
    %v2110 = vadd.f32 %v2109, 1.0
    %v2111 = vrcp.pop %v2110
    %v2112 = vmul.f32 1.0, %v2111
    %v2113 = vxor.u32 %v2104, 2147483648
    %v2114 = vmul.f32 %v2113, 1.442695
    %v2115 = vpow.pop %v2114
    %v2116 = vadd.f32 %v2115, 1.0
    %v2117 = vrcp.pop %v2116
    %v2118 = vmul.f32 1.0, %v2117
    %v2119 = vtanh.pop %v2105
    %v2120 = vxor.u32 %v2106, 2147483648
    %v2121 = vmul.f32 %v2120, 1.442695
    %v2122 = vpow.pop %v2121
    %v2123 = vadd.f32 %v2122, 1.0
    %v2124 = vrcp.pop %v2123
    %v2125 = vmul.f32 1.0, %v2124
    %v2126 = vmul.f32 %v2118, %v1323
    %v2127 = vmul.f32 %v2112, %v2119
    %v2128 = vadd.f32 %v2126, %v2127
    %v2129 = vtanh.pop %v2128
    %v2130 = vmul.f32 %v2125, %v2129
    %v2131 = vpack.c.bf16 %v2130, %v2130
    %s2132 = sadd.s32 %s1326, 3
    %s2133 = smul.u32 %s2132, 8
    %v2134 = vpack.c.bf16 %v1819, %v1819
    %2135 = vmatprep.subr.bf16.mxu0 %v1587
    %2136 = vmatpush1.bf16.msra.mxu0 %v1586
    %2137 = vmatprep.subr.bf16.mxu0 %v1591
    %2138 = vmatpush1.bf16.msra.mxu0 %v1590
    %2139 = vmatprep.subr.bf16.mxu0 %v1595
    %2140 = vmatpush1.bf16.msra.mxu0 %v1594
    %2141 = vmatprep.subr.bf16.mxu0 %v1599
    %2142 = vmatpush1.bf16.msra.mxu0 %v1598
    %2143 = vmatprep.subr.bf16.mxu0 %v1603
    %2144 = vmatpush1.bf16.msra.mxu0 %v1602
    %2145 = vmatprep.subr.bf16.mxu0 %v1607
    %2146 = vmatpush1.bf16.msra.mxu0 %v1606
    %2147 = vmatprep.subr.bf16.mxu0 %v1611
    %2148 = vmatpush1.bf16.msra.mxu0 %v1610
    %2149 = vmatprep.subr.bf16.mxu0 %v1615
    %2150 = vmatpush1.bf16.msra.mxu0 %v1614
    %2151 = vmatprep.subr.bf16.mxu0 %v1619
    %2152 = vmatpush1.bf16.msra.mxu0 %v1618
    %2153 = vmatprep.subr.bf16.mxu0 %v1623
    %2154 = vmatpush1.bf16.msra.mxu0 %v1622
    %2155 = vmatprep.subr.bf16.mxu0 %v1627
    %2156 = vmatpush1.bf16.msra.mxu0 %v1626
    %2157 = vmatprep.subr.bf16.mxu0 %v1631
    %2158 = vmatpush1.bf16.msra.mxu0 %v1630
    %2159 = vmatprep.subr.bf16.mxu0 %v1635
    %2160 = vmatpush1.bf16.msra.mxu0 %v1634
    %2161 = vmatprep.subr.bf16.mxu0 %v1639
    %2162 = vmatpush1.bf16.msra.mxu0 %v1638
    %2163 = vmatprep.subr.bf16.mxu0 %v1643
    %2164 = vmatpush1.bf16.msra.mxu0 %v1642
    %2165 = vmatprep.subr.bf16.mxu0 %v1647
    %2166 = vmatpush1.bf16.msra.mxu0 %v1646
    %2167 = vmatprep.mubr.bf16.mxu0 %v2134
    %2168 = vmatmul.mubr.bf16.gmra.mrb[0].mxu0 %v2131
    %v2169 = vpop.f32.mrb[0].mxu0
    %v2170 = vadd.f32 %v473, %v2169
    %v2171 = vpop.f32.mrb[0].mxu0
    %v2172 = vadd.f32 %v477, %v2171
    %v2173 = vpop.f32.mrb[0].mxu0
    %v2174 = vpop.f32.mrb[0].mxu0
    %2175 = vdwg.mxu0
    %2176 = vmatprep.subr.bf16.mxu0 %v1589
    %2177 = vmatpush1.bf16.msra.mxu0 %v1588
    %2178 = vmatprep.subr.bf16.mxu0 %v1593
    %2179 = vmatpush1.bf16.msra.mxu0 %v1592
    %2180 = vmatprep.subr.bf16.mxu0 %v1597
    %2181 = vmatpush1.bf16.msra.mxu0 %v1596
    %2182 = vmatprep.subr.bf16.mxu0 %v1601
    %2183 = vmatpush1.bf16.msra.mxu0 %v1600
    %2184 = vmatprep.subr.bf16.mxu0 %v1605
    %2185 = vmatpush1.bf16.msra.mxu0 %v1604
    %2186 = vmatprep.subr.bf16.mxu0 %v1609
    %2187 = vmatpush1.bf16.msra.mxu0 %v1608
    %2188 = vmatprep.subr.bf16.mxu0 %v1613
    %2189 = vmatpush1.bf16.msra.mxu0 %v1612
    %2190 = vmatprep.subr.bf16.mxu0 %v1617
    %2191 = vmatpush1.bf16.msra.mxu0 %v1616
    %2192 = vmatprep.subr.bf16.mxu0 %v1621
    %2193 = vmatpush1.bf16.msra.mxu0 %v1620
    %2194 = vmatprep.subr.bf16.mxu0 %v1625
    %2195 = vmatpush1.bf16.msra.mxu0 %v1624
    %2196 = vmatprep.subr.bf16.mxu0 %v1629
    %2197 = vmatpush1.bf16.msra.mxu0 %v1628
    %2198 = vmatprep.subr.bf16.mxu0 %v1633
    %2199 = vmatpush1.bf16.msra.mxu0 %v1632
    %2200 = vmatprep.subr.bf16.mxu0 %v1637
    %2201 = vmatpush1.bf16.msra.mxu0 %v1636
    %2202 = vmatprep.subr.bf16.mxu0 %v1641
    %2203 = vmatpush1.bf16.msra.mxu0 %v1640
    %2204 = vmatprep.subr.bf16.mxu0 %v1645
    %2205 = vmatpush1.bf16.msra.mxu0 %v1644
    %2206 = vmatprep.subr.bf16.mxu0 %v1649
    %2207 = vmatpush1.bf16.msra.mxu0 %v1648
    %2208 = vmatprep.mubr.bf16.mxu0 %v2134
    %2209 = vmatmul.mubr.bf16.gmra.mrb[0].mxu0 %v2131
    %v2210 = vpop.f32.mrb[0].mxu0
    %v2211 = vadd.f32 %v481, %v2210
    %v2212 = vpop.f32.mrb[0].mxu0
    %v2213 = vadd.f32 %v485, %v2212
    %v2214 = vpop.f32.mrb[0].mxu0
    %v2215 = vpop.f32.mrb[0].mxu0
    %2216 = vdwg.mxu0
    %v2217 = vxor.u32 %v2170, 2147483648
    %v2218 = vmul.f32 %v2217, 1.442695
    %v2219 = vpow.pop %v2218
    %v2220 = vadd.f32 %v2219, 1.0
    %v2221 = vrcp.pop %v2220
    %v2222 = vmul.f32 1.0, %v2221
    %v2223 = vxor.u32 %v2172, 2147483648
    %v2224 = vmul.f32 %v2223, 1.442695
    %v2225 = vpow.pop %v2224
    %v2226 = vadd.f32 %v2225, 1.0
    %v2227 = vrcp.pop %v2226
    %v2228 = vmul.f32 1.0, %v2227
    %v2229 = vtanh.pop %v2211
    %v2230 = vxor.u32 %v2213, 2147483648
    %v2231 = vmul.f32 %v2230, 1.442695
    %v2232 = vpow.pop %v2231
    %v2233 = vadd.f32 %v2232, 1.0
    %v2234 = vrcp.pop %v2233
    %v2235 = vmul.f32 1.0, %v2234
    %v2236 = vmul.f32 %v2228, %v1817
    %v2237 = vmul.f32 %v2222, %v2229
    %v2238 = vadd.f32 %v2236, %v2237
    %v2239 = vtanh.pop %v2238
    %v2240 = vmul.f32 %v2235, %v2239
    %s2241 = sshra.s32 %s2133, 3
    %s2242 = sand.u32 %s2133, 7
    %s2243 = smul.u32 %s2241, 4
    %s2244 = smul.addr %s2243, 8
    %s2245 = scalar_lea.vmem [#allocation2], %s2244
    %v2246 = vld [vmem:[%s2245] sm:$0xff]
    %v2247 = vld [vmem:[%s2245 + $0x8] sm:$0xff]
    %v2248 = vld [vmem:[%s2245 + $0x10] sm:$0xff]
    %v2249 = vld [vmem:[%s2245 + $0x18] sm:$0xff]
    %2250 = vmatprep.subr.bf16.mxu0 %v1958
    %2251 = vmatpush1.bf16.msra.mxu0 %v1957
    %2252 = vmatprep.subr.bf16.mxu0 %v1962
    %2253 = vmatpush1.bf16.msra.mxu0 %v1961
    %2254 = vmatprep.subr.bf16.mxu0 %v1966
    %2255 = vmatpush1.bf16.msra.mxu0 %v1965
    %2256 = vmatprep.subr.bf16.mxu0 %v1970
    %2257 = vmatpush1.bf16.msra.mxu0 %v1969
    %2258 = vmatprep.subr.bf16.mxu0 %v1974
    %2259 = vmatpush1.bf16.msra.mxu0 %v1973
    %2260 = vmatprep.subr.bf16.mxu0 %v1978
    %2261 = vmatpush1.bf16.msra.mxu0 %v1977
    %2262 = vmatprep.subr.bf16.mxu0 %v1982
    %2263 = vmatpush1.bf16.msra.mxu0 %v1981
    %2264 = vmatprep.subr.bf16.mxu0 %v1986
    %2265 = vmatpush1.bf16.msra.mxu0 %v1985
    %2266 = vmatprep.subr.bf16.mxu0 0
    %2267 = vmatpush1.bf16.msra.mxu0 0
    %2268 = vmatprep.subr.bf16.mxu0 0
    %2269 = vmatpush1.bf16.msra.mxu0 0
    %2270 = vmatprep.subr.bf16.mxu0 0
    %2271 = vmatpush1.bf16.msra.mxu0 0
    %2272 = vmatprep.subr.bf16.mxu0 0
    %2273 = vmatpush1.bf16.msra.mxu0 0
    %2274 = vmatprep.subr.bf16.mxu0 0
    %2275 = vmatpush1.bf16.msra.mxu0 0
    %2276 = vmatprep.subr.bf16.mxu0 0
    %2277 = vmatpush1.bf16.msra.mxu0 0
    %2278 = vmatprep.subr.bf16.mxu0 0
    %2279 = vmatpush1.bf16.msra.mxu0 0
    %2280 = vmatprep.subr.bf16.mxu0 0
    %2281 = vmatpush1.bf16.msra.mxu0 0
    %2282 = vmatprep.mubr.bf16.mxu0 0
    %2283 = vmatmul.mubr.bf16.gmra.mrb[0].mxu0 %v2131
    %v2284 = vpop.f32.mrb[0].mxu0
    %v2285 = vadd.f32 0.0, %v2284
    %v2286 = vpop.f32.mrb[0].mxu0
    %v2287 = vadd.f32 0.0, %v2286
    %v2288 = vpop.f32.mrb[0].mxu0
    %v2289 = vpop.f32.mrb[0].mxu0
    %2290 = vdwg.mxu0
    %2291 = vmatprep.subr.bf16.mxu0 %v1960
    %2292 = vmatpush1.bf16.msra.mxu0 %v1959
    %2293 = vmatprep.subr.bf16.mxu0 %v1964
    %2294 = vmatpush1.bf16.msra.mxu0 %v1963
    %2295 = vmatprep.subr.bf16.mxu0 %v1968
    %2296 = vmatpush1.bf16.msra.mxu0 %v1967
    %2297 = vmatprep.subr.bf16.mxu0 %v1972
    %2298 = vmatpush1.bf16.msra.mxu0 %v1971
    %2299 = vmatprep.subr.bf16.mxu0 %v1976
    %2300 = vmatpush1.bf16.msra.mxu0 %v1975
    %2301 = vmatprep.subr.bf16.mxu0 %v1980
    %2302 = vmatpush1.bf16.msra.mxu0 %v1979
    %2303 = vmatprep.subr.bf16.mxu0 %v1984
    %2304 = vmatpush1.bf16.msra.mxu0 %v1983
    %2305 = vmatprep.subr.bf16.mxu0 %v1988
    %2306 = vmatpush1.bf16.msra.mxu0 %v1987
    %2307 = vmatprep.subr.bf16.mxu0 0
    %2308 = vmatpush1.bf16.msra.mxu0 0
    %2309 = vmatprep.subr.bf16.mxu0 0
    %2310 = vmatpush1.bf16.msra.mxu0 0
    %2311 = vmatprep.subr.bf16.mxu0 0
    %2312 = vmatpush1.bf16.msra.mxu0 0
    %2313 = vmatprep.subr.bf16.mxu0 0
    %2314 = vmatpush1.bf16.msra.mxu0 0
    %2315 = vmatprep.subr.bf16.mxu0 0
    %2316 = vmatpush1.bf16.msra.mxu0 0
    %2317 = vmatprep.subr.bf16.mxu0 0
    %2318 = vmatpush1.bf16.msra.mxu0 0
    %2319 = vmatprep.subr.bf16.mxu0 0
    %2320 = vmatpush1.bf16.msra.mxu0 0
    %2321 = vmatprep.subr.bf16.mxu0 0
    %2322 = vmatpush1.bf16.msra.mxu0 0
    %2323 = vmatprep.mubr.bf16.mxu0 0
    %2324 = vmatmul.mubr.bf16.gmra.mrb[0].mxu0 %v2131
    %v2325 = vpop.f32.mrb[0].mxu0
    %v2326 = vadd.f32 0.0, %v2325
    %v2327 = vpop.f32.mrb[0].mxu0
    %v2328 = vadd.f32 0.0, %v2327
    %v2329 = vpop.f32.mrb[0].mxu0
    %v2330 = vpop.f32.mrb[0].mxu0
    %2331 = vdwg.mxu0
    %v2332 = vadd.f32 %v2246, %v2285
    %v2333 = vadd.f32 %v2247, %v2287
    %v2334 = vadd.f32 %v2248, %v2326
    %v2335 = vadd.f32 %v2249, %v2328
    %v2336 = vxor.u32 %v2332, 2147483648
    %v2337 = vmul.f32 %v2336, 1.442695
    %v2338 = vpow.pop %v2337
    %v2339 = vadd.f32 %v2338, 1.0
    %v2340 = vrcp.pop %v2339
    %v2341 = vmul.f32 1.0, %v2340
    %v2342 = vxor.u32 %v2333, 2147483648
    %v2343 = vmul.f32 %v2342, 1.442695
    %v2344 = vpow.pop %v2343
    %v2345 = vadd.f32 %v2344, 1.0
    %v2346 = vrcp.pop %v2345
    %v2347 = vmul.f32 1.0, %v2346
    %v2348 = vtanh.pop %v2334
    %v2349 = vxor.u32 %v2335, 2147483648
    %v2350 = vmul.f32 %v2349, 1.442695
    %v2351 = vpow.pop %v2350
    %v2352 = vadd.f32 %v2351, 1.0
    %v2353 = vrcp.pop %v2352
    %v2354 = vmul.f32 1.0, %v2353
    %v2355 = vmul.f32 %v2347, %v2128
    %v2356 = vmul.f32 %v2341, %v2348
    %v2357 = vadd.f32 %v2355, %v2356
    %v2358 = vtanh.pop %v2357
    %v2359 = vmul.f32 %v2354, %v2358
    %v2360 = vpack.c.bf16 %v2359, %v2359
  $region45: #{lstm_forward.1} parent=0 // loop_footer
    %s1321 = sadd.s32 1, %s1317
  $region46: #{lstm_forward.1} parent=0 // loop_footer_branch
    %1316 = sbr.rel target = $region42
  $region47: #{lstm_forward.1} parent=0 // loop_exit
    _
  %v2361 = vpack.c.bf16 %v1324, %v1324
  %2362 = vmatprep.subr.bf16.mxu0 %v776
  %2363 = vmatpush1.bf16.msra.mxu0 %v775
  %2364 = vmatprep.subr.bf16.mxu0 %v780
  %2365 = vmatpush1.bf16.msra.mxu0 %v779
  %2366 = vmatprep.subr.bf16.mxu0 %v784
  %2367 = vmatpush1.bf16.msra.mxu0 %v783
  %2368 = vmatprep.subr.bf16.mxu0 %v788
  %2369 = vmatpush1.bf16.msra.mxu0 %v787
  %2370 = vmatprep.subr.bf16.mxu0 %v792
  %2371 = vmatpush1.bf16.msra.mxu0 %v791
  %2372 = vmatprep.subr.bf16.mxu0 %v796
  %2373 = vmatpush1.bf16.msra.mxu0 %v795
  %2374 = vmatprep.subr.bf16.mxu0 %v800
  %2375 = vmatpush1.bf16.msra.mxu0 %v799
  %2376 = vmatprep.subr.bf16.mxu0 %v804
  %2377 = vmatpush1.bf16.msra.mxu0 %v803
  %2378 = vmatprep.subr.bf16.mxu0 %v808
  %2379 = vmatpush1.bf16.msra.mxu0 %v807
  %2380 = vmatprep.subr.bf16.mxu0 %v812
  %2381 = vmatpush1.bf16.msra.mxu0 %v811
  %2382 = vmatprep.subr.bf16.mxu0 %v816
  %2383 = vmatpush1.bf16.msra.mxu0 %v815
  %2384 = vmatprep.subr.bf16.mxu0 %v820
  %2385 = vmatpush1.bf16.msra.mxu0 %v819
  %2386 = vmatprep.subr.bf16.mxu0 %v824
  %2387 = vmatpush1.bf16.msra.mxu0 %v823
  %2388 = vmatprep.subr.bf16.mxu0 %v828
  %2389 = vmatpush1.bf16.msra.mxu0 %v827
  %2390 = vmatprep.subr.bf16.mxu0 %v832
  %2391 = vmatpush1.bf16.msra.mxu0 %v831
  %2392 = vmatprep.subr.bf16.mxu0 %v836
  %2393 = vmatpush1.bf16.msra.mxu0 %v835
  %2394 = vmatprep.mubr.bf16.mxu0 %v2361
  %2395 = vmatmul.mubr.bf16.gmra.mrb[0].mxu0 %v1322
  %v2396 = vpop.f32.mrb[0].mxu0
  %v2397 = vadd.f32 %v473, %v2396
  %v2398 = vpop.f32.mrb[0].mxu0
  %v2399 = vadd.f32 %v477, %v2398
  %v2400 = vpop.f32.mrb[0].mxu0
  %v2401 = vpop.f32.mrb[0].mxu0
  %2402 = vdwg.mxu0
  %2403 = vmatprep.subr.bf16.mxu0 %v778
  %2404 = vmatpush1.bf16.msra.mxu0 %v777
  %2405 = vmatprep.subr.bf16.mxu0 %v782
  %2406 = vmatpush1.bf16.msra.mxu0 %v781
  %2407 = vmatprep.subr.bf16.mxu0 %v786
  %2408 = vmatpush1.bf16.msra.mxu0 %v785
  %2409 = vmatprep.subr.bf16.mxu0 %v790
  %2410 = vmatpush1.bf16.msra.mxu0 %v789
  %2411 = vmatprep.subr.bf16.mxu0 %v794
  %2412 = vmatpush1.bf16.msra.mxu0 %v793
  %2413 = vmatprep.subr.bf16.mxu0 %v798
  %2414 = vmatpush1.bf16.msra.mxu0 %v797
  %2415 = vmatprep.subr.bf16.mxu0 %v802
  %2416 = vmatpush1.bf16.msra.mxu0 %v801
  %2417 = vmatprep.subr.bf16.mxu0 %v806
  %2418 = vmatpush1.bf16.msra.mxu0 %v805
  %2419 = vmatprep.subr.bf16.mxu0 %v810
  %2420 = vmatpush1.bf16.msra.mxu0 %v809
  %2421 = vmatprep.subr.bf16.mxu0 %v814
  %2422 = vmatpush1.bf16.msra.mxu0 %v813
  %2423 = vmatprep.subr.bf16.mxu0 %v818
  %2424 = vmatpush1.bf16.msra.mxu0 %v817
  %2425 = vmatprep.subr.bf16.mxu0 %v822
  %2426 = vmatpush1.bf16.msra.mxu0 %v821
  %2427 = vmatprep.subr.bf16.mxu0 %v826
  %2428 = vmatpush1.bf16.msra.mxu0 %v825
  %2429 = vmatprep.subr.bf16.mxu0 %v830
  %2430 = vmatpush1.bf16.msra.mxu0 %v829
  %2431 = vmatprep.subr.bf16.mxu0 %v834
  %2432 = vmatpush1.bf16.msra.mxu0 %v833
  %2433 = vmatprep.subr.bf16.mxu0 %v838
  %2434 = vmatpush1.bf16.msra.mxu0 %v837
  %2435 = vmatprep.mubr.bf16.mxu0 %v2361
  %2436 = vmatmul.mubr.bf16.gmra.mrb[0].mxu0 %v1322
  %v2437 = vpop.f32.mrb[0].mxu0
  %v2438 = vadd.f32 %v481, %v2437
  %v2439 = vpop.f32.mrb[0].mxu0
  %v2440 = vadd.f32 %v485, %v2439
  %v2441 = vpop.f32.mrb[0].mxu0
  %v2442 = vpop.f32.mrb[0].mxu0
  %2443 = vdwg.mxu0
  %v2444 = vxor.u32 %v2397, 2147483648
  %v2445 = vmul.f32 %v2444, 1.442695
  %v2446 = vpow.pop %v2445
  %v2447 = vadd.f32 %v2446, 1.0
  %v2448 = vrcp.pop %v2447
  %v2449 = vmul.f32 1.0, %v2448
  %v2450 = vxor.u32 %v2399, 2147483648
  %v2451 = vmul.f32 %v2450, 1.442695
  %v2452 = vpow.pop %v2451
  %v2453 = vadd.f32 %v2452, 1.0
  %v2454 = vrcp.pop %v2453
  %v2455 = vmul.f32 1.0, %v2454
  %v2456 = vtanh.pop %v2438
  %v2457 = vxor.u32 %v2440, 2147483648
  %v2458 = vmul.f32 %v2457, 1.442695
  %v2459 = vpow.pop %v2458
  %v2460 = vadd.f32 %v2459, 1.0
  %v2461 = vrcp.pop %v2460
  %v2462 = vmul.f32 1.0, %v2461
  %v2463 = vmul.f32 %v2455, %v1325
  %v2464 = vmul.f32 %v2449, %v2456
  %v2465 = vadd.f32 %v2463, %v2464
  %v2466 = vtanh.pop %v2465
  %v2467 = vmul.f32 %v2462, %v2466
  %v2468 = vmax.f32 %v2467, 0.0
  %v2469 = vld [vmem:[%s6] sm:$0xff]
  %v2470 = vld [vmem:[%s6 + $0x8] sm:$0xff]
  %v2471 = vld [vmem:[%s6 + $0x10] sm:$0xff]
  %v2472 = vld [vmem:[%s6 + $0x18] sm:$0xff]
  %v2473 = vld [vmem:[%s6 + $0x20] sm:$0xff]
  %v2474 = vld [vmem:[%s6 + $0x28] sm:$0xff]
  %v2475 = vld [vmem:[%s6 + $0x30] sm:$0xff]
  %v2476 = vld [vmem:[%s6 + $0x38] sm:$0xff]
  %v2477 = vld [vmem:[%s6 + $0x40] sm:$0xff]
  %v2478 = vld [vmem:[%s6 + $0x48] sm:$0xff]
  %v2479 = vld [vmem:[%s6 + $0x50] sm:$0xff]
  %v2480 = vld [vmem:[%s6 + $0x58] sm:$0xff]
  %v2481 = vld [vmem:[%s6 + $0x60] sm:$0xff]
  %v2482 = vld [vmem:[%s6 + $0x68] sm:$0xff]
  %v2483 = vld [vmem:[%s6 + $0x70] sm:$0xff]
  %v2484 = vld [vmem:[%s6 + $0x78] sm:$0xff]
  %v2485 = vld [vmem:[%s7] sm:$0x1]
  %v2487 = vlaneseq
  %v2488 = vshrl.u32 %v2487, 7
  %v2489 = vsub.s32 0, %v2488
  %v2490 = vrot.slane %v2485, %v2489
  %2492 = vmatprep.subr.mxu0 0.0
  %2493 = vmatpush1.msra.mxu0 %v2469
  %2494 = vmatprep.subr.mxu0 0.0
  %2495 = vmatpush1.msra.mxu0 %v2470
  %2496 = vmatprep.subr.mxu0 0.0
  %2497 = vmatpush1.msra.mxu0 %v2471
  %2498 = vmatprep.subr.mxu0 0.0
  %2499 = vmatpush1.msra.mxu0 %v2472
  %2500 = vmatprep.subr.mxu0 0.0
  %2501 = vmatpush1.msra.mxu0 %v2473
  %2502 = vmatprep.subr.mxu0 0.0
  %2503 = vmatpush1.msra.mxu0 %v2474
  %2504 = vmatprep.subr.mxu0 0.0
  %2505 = vmatpush1.msra.mxu0 %v2475
  %2506 = vmatprep.subr.mxu0 0.0
  %2507 = vmatpush1.msra.mxu0 %v2476
  %2508 = vmatprep.subr.mxu0 0.0
  %2509 = vmatpush1.msra.mxu0 %v2477
  %2510 = vmatprep.subr.mxu0 0.0
  %2511 = vmatpush1.msra.mxu0 %v2478
  %2512 = vmatprep.subr.mxu0 0.0
  %2513 = vmatpush1.msra.mxu0 %v2479
  %2514 = vmatprep.subr.mxu0 0.0
  %2515 = vmatpush1.msra.mxu0 %v2480
  %2516 = vmatprep.subr.mxu0 0.0
  %2517 = vmatpush1.msra.mxu0 %v2481
  %2518 = vmatprep.subr.mxu0 0.0
  %2519 = vmatpush1.msra.mxu0 %v2482
  %2520 = vmatprep.subr.mxu0 0.0
  %2521 = vmatpush1.msra.mxu0 %v2483
  %2522 = vmatprep.subr.mxu0 0.0
  %2523 = vmatpush1.msra.mxu0 %v2484
  %2524 = vmatprep.subr.mxu0 0.0
  %2525 = vmatpush1.msra.mxu0 0.0
  %2526 = vmatprep.subr.mxu0 0.0
  %2527 = vmatpush1.msra.mxu0 0.0
  %2528 = vmatprep.subr.mxu0 0.0
  %2529 = vmatpush1.msra.mxu0 0.0
  %2530 = vmatprep.subr.mxu0 0.0
  %2531 = vmatpush1.msra.mxu0 0.0
  %2532 = vmatprep.subr.mxu0 0.0
  %2533 = vmatpush1.msra.mxu0 0.0
  %2534 = vmatprep.subr.mxu0 0.0
  %2535 = vmatpush1.msra.mxu0 0.0
  %2536 = vmatprep.subr.mxu0 0.0
  %2537 = vmatpush1.msra.mxu0 0.0
  %2538 = vmatprep.subr.mxu0 0.0
  %2539 = vmatpush1.msra.mxu0 0.0
  %2540 = vmatprep.subr.mxu0 0.0
  %2541 = vmatpush1.msra.mxu0 0.0
  %2542 = vmatprep.subr.mxu0 0.0
  %2543 = vmatpush1.msra.mxu0 0.0
  %2544 = vmatprep.subr.mxu0 0.0
  %2545 = vmatpush1.msra.mxu0 0.0
  %2546 = vmatprep.subr.mxu0 0.0
  %2547 = vmatpush1.msra.mxu0 0.0
  %2548 = vmatprep.subr.mxu0 0.0
  %2549 = vmatpush1.msra.mxu0 0.0
  %2550 = vmatprep.subr.mxu0 0.0
  %2551 = vmatpush1.msra.mxu0 0.0
  %2552 = vmatprep.subr.mxu0 0.0
  %2553 = vmatpush1.msra.mxu0 0.0
  %2554 = vmatprep.subr.mxu0 0.0
  %2555 = vmatpush1.msra.mxu0 0.0
  %2556 = vmatprep.mubr.f32.mxu0 0.0
  %2557 = vmatmul.mubr.f32.gmra.mrb[0].mxu0 %v2468
  %v2558 = vpop.f32.mrb[0].mxu0
  %v2559 = vadd.f32 %v2490, %v2558
  %v2560 = vpop.f32.mrb[0].mxu0
  %2561 = vdwg.mxu0
  %2562 = vst [vmem:[%s8] sm:$0xff] %v2559
  // Predicated region
  $region48: #{lstm_forward.1} parent=0 // pred_check
    _
  $region49: #{lstm_forward.1} parent=0 // pred_check_branch
    %2564 = sbr.rel (0) target = $region51
  $region50: #{lstm_forward.1} parent=0 // pred_region
    _
  $region51: #{lstm_forward.1} parent=0 // pred_fallthru
    _
  // Predicated region
  $region52: #{lstm_forward.1} parent=0 // pred_check
    _
  $region53: #{lstm_forward.1} parent=0 // pred_check_branch
    %2566 = sbr.rel (0) target = $region55
  $region54: #{lstm_forward.1} parent=0 // pred_region
    _
  $region55: #{lstm_forward.1} parent=0 // pred_fallthru
    _

</llo_original>
